<compile_context>
chip_gen: v5e
topology: v5e:2x2
jax: 0.10.0
libtpu: 0.0.40
codegen_flags: <defaults>
</compile_context>

<pallas_src>
import functools

import jax
import jax.numpy as jnp
from jax.experimental import pallas as pl
from jax.experimental.pallas import tpu as pltpu


def _reflect_pad_1(t):
    """1-pixel reflection pad of a (H, W, C) tile, entirely in VMEM."""
    # rows: [1, 0..H-1, H-2]
    t = jnp.concatenate([t[1:2], t, t[-2:-1]], axis=0)        # (H+2, W, C)
    # cols: [1, 0..W-1, W-2]
    t = jnp.concatenate([t[:, 1:2], t, t[:, -2:-1]], axis=1)  # (H+2, W+2, C)
    return t


def _im2col_3x3(xp, H, W, C):
    """xp: (H+2, W+2, C) padded tile -> (H*W, 9*C) patch matrix.

    Column order is (kh, kw, cin), matching the folded weight layout below.
    """
    rows = []
    for kh in range(3):
        slab = xp[kh:kh + H]                                   # (H, W+2, C)
        rows.append(jnp.concatenate(
            [slab[:, kw:kw + W, :] for kw in range(3)], axis=-1))  # (H, W, 3C)
    patches = jnp.concatenate(rows, axis=-1)                   # (H, W, 9C)
    return patches.reshape(H * W, 9 * C)


def _residual_block_kernel(alpha_ref, x_ref, w1_ref, b1_ref, w2_ref, b2_ref,
                           o_ref, *, compute_dtype):
    # alpha_ref: (1,) f32 in SMEM        PReLU slope
    # x_ref    : (1, H, W, C)            input tile (also the residual)
    # w*_ref   : (9*C, C)                im2col-folded conv weights
    # b*_ref   : (1, C)                  biases
    # o_ref    : (1, H*W, C)             output slab (reshaped to NHWC outside)
    _, H, W, C = x_ref.shape
    x = x_ref[0].astype(jnp.float32)                           # (H, W, C)
    alpha = alpha_ref[0]

    # ---- conv1 (3x3, reflect pad 1) + bias + PReLU; `h` never leaves VMEM ----
    p1 = _im2col_3x3(_reflect_pad_1(x), H, W, C)               # (H*W, 9C)
    h = jnp.dot(p1.astype(compute_dtype), w1_ref[...],
                preferred_element_type=jnp.float32) + b1_ref[...]
    h = jnp.where(h > 0, h, alpha * h)                         # PReLU (scalar slope)

    # ---- conv2 (3x3, reflect pad 1) + bias, * 0.1, + residual ----
    p2 = _im2col_3x3(_reflect_pad_1(h.reshape(H, W, C)), H, W, C)
    y = jnp.dot(p2.astype(compute_dtype), w2_ref[...],
                preferred_element_type=jnp.float32) + b2_ref[...]
    y = y * jnp.float32(0.1) + x.reshape(H * W, C)

    o_ref[0] = y.astype(o_ref.dtype)                           # direct (H*W, C) store


def _fold_conv_weight(w_oihw, C, compute_dtype):
    # (O, I, kh, kw) -> (kh, kw, I, O) -> (9*I, O); row index = (kh*3+kw)*C + ci,
    # matching the im2col patch column order.
    return jnp.transpose(w_oihw, (2, 3, 1, 0)).reshape(9 * C, C).astype(compute_dtype)


def residual_block_nhwc(x_nhwc, w1_oihw, b1, w2_oihw, b2, alpha,
                        *, compute_dtype=jnp.float32):
    """Fused ResidualBlock forward, NHWC-native. x_nhwc: (N, H, W, C)."""
    N, H, W, C = x_nhwc.shape
    w1f = _fold_conv_weight(jnp.asarray(w1_oihw, jnp.float32), C, compute_dtype)
    w2f = _fold_conv_weight(jnp.asarray(w2_oihw, jnp.float32), C, compute_dtype)
    b1r = jnp.asarray(b1, jnp.float32).reshape(1, C)
    b2r = jnp.asarray(b2, jnp.float32).reshape(1, C)
    a = jnp.asarray(alpha, jnp.float32).reshape(1)

    kernel = functools.partial(_residual_block_kernel, compute_dtype=compute_dtype)
    out_flat = pl.pallas_call(
        kernel,
        out_shape=jax.ShapeDtypeStruct((N, H * W, C), x_nhwc.dtype),
        grid=(N,),
        in_specs=[
            pl.BlockSpec(memory_space=pltpu.MemorySpace.SMEM),       # alpha (scalar)
            pl.BlockSpec((1, H, W, C), lambda n: (n, 0, 0, 0)),      # x
            pl.BlockSpec((9 * C, C), lambda n: (0, 0)),              # w1 (folded)
            pl.BlockSpec((1, C), lambda n: (0, 0)),                  # b1
            pl.BlockSpec((9 * C, C), lambda n: (0, 0)),              # w2 (folded)
            pl.BlockSpec((1, C), lambda n: (0, 0)),                  # b2
        ],
        out_specs=pl.BlockSpec((1, H * W, C), lambda n: (n, 0, 0)),
        compiler_params=pltpu.CompilerParams(
            dimension_semantics=("parallel",)),                      # batch across TCs
    )(a, x_nhwc, w1f, b1r, w2f, b2r)
    return out_flat.reshape(N, H, W, C)


def residual_block_nchw(x_nchw, w1, b1, w2, b2, alpha, *, compute_dtype=jnp.float32):
    """PyTorch-layout wrapper (NCHW). Prefer residual_block_nhwc in a full network
    to avoid the boundary transposes."""
    x = jnp.transpose(x_nchw, (0, 2, 3, 1))
    y = residual_block_nhwc(x, w1, b1, w2, b2, alpha, compute_dtype=compute_dtype)
    return jnp.transpose(y, (0, 3, 1, 2))


def _reference(x, w1, b1, w2, b2, alpha):
    """Pure-JAX reference (NCHW), same semantics as the PyTorch module."""
    def conv(inp, w, b):
        xp = jnp.pad(inp, ((0, 0), (0, 0), (1, 1), (1, 1)), mode="reflect")
        y = jax.lax.conv_general_dilated(
            xp, w, (1, 1), "VALID",
            dimension_numbers=("NCHW", "OIHW", "NCHW"))
        return y + b[None, :, None, None]

    h = conv(x, w1, b1)
    h = jnp.where(h > 0, h, alpha * h)
    return conv(h, w2, b2) * 0.1 + x


if __name__ == "__main__":
    N, C, H, W = 2, 4, 16, 16

    key = jax.random.PRNGKey(0)
    kx, k1, kb1, k2, kb2 = jax.random.split(key, 5)

    x = jax.random.normal(kx, (N, C, H, W), jnp.float32)
    # Conv2d(channels, channels, 3) weights: (O, I, 3, 3).
    w1 = jax.random.normal(k1, (C, C, 3, 3), jnp.float32) * 0.1
    b1 = jax.random.normal(kb1, (C,), jnp.float32) * 0.1
    w2 = jax.random.normal(k2, (C, C, 3, 3), jnp.float32) * 0.1
    b2 = jax.random.normal(kb2, (C,), jnp.float32) * 0.1
    alpha = jnp.float32(0.25)  # nn.PReLU() default single-parameter init

    fwd = jax.jit(residual_block_nchw)
    out = jax.block_until_ready(fwd(x, w1, b1, w2, b2, alpha))

    ref = _reference(x, w1, b1, w2, b2, alpha)
    assert out.shape == (N, C, H, W)
    max_err = float(jnp.max(jnp.abs(out - ref)))
    assert jnp.allclose(out, ref, atol=1e-4, rtol=1e-4), f"max err {max_err}"

    print("KERNEL_OK")
</pallas_src>

<mosaic_0001>
module attributes {stable_mosaic.version = 11 : i64} {
  func.func @_residual_block_kernel(%arg0: i32, %arg1: memref<1xf32, #tpu.memory_space<smem>>, %arg2: memref<1x16x16x4xf32, #tpu.memory_space<vmem>>, %arg3: memref<36x4xf32, #tpu.memory_space<vmem>>, %arg4: memref<1x4xf32, #tpu.memory_space<vmem>>, %arg5: memref<36x4xf32, #tpu.memory_space<vmem>>, %arg6: memref<1x4xf32, #tpu.memory_space<vmem>>, %arg7: memref<1x256x4xf32, #tpu.memory_space<vmem>>) attributes {dimension_semantics = [#tpu.dimension_semantics<parallel>], iteration_bounds = array<i64: 2>, scalar_prefetch = 0 : i64, scratch_operands = 0 : i64, tpu.core_type = #tpu.core_type<tc>, window_params = [{transform_indices = @transform_0, window_bounds = array<i64: 1>}, {transform_indices = @transform_1, window_bounds = array<i64: 1, 16, 16, 4>}, {pipeline_mode = #tpu.pipeline_mode<synchronous>, transform_indices = @transform_2, window_bounds = array<i64: 36, 4>}, {pipeline_mode = #tpu.pipeline_mode<synchronous>, transform_indices = @transform_3, window_bounds = array<i64: 1, 4>}, {pipeline_mode = #tpu.pipeline_mode<synchronous>, transform_indices = @transform_4, window_bounds = array<i64: 36, 4>}, {pipeline_mode = #tpu.pipeline_mode<synchronous>, transform_indices = @transform_5, window_bounds = array<i64: 1, 4>}, {transform_indices = @transform_6, window_bounds = array<i64: 1, 256, 4>}]} {
    %c0 = arith.constant 0 : index
    %c0_0 = arith.constant 0 : index
    %c0_1 = arith.constant 0 : index
    %c0_2 = arith.constant 0 : index
    %0 = vector.load %arg2[%c0, %c0_0, %c0_1, %c0_2] : memref<1x16x16x4xf32, #tpu.memory_space<vmem>>, vector<1x16x16x4xf32>
    %1 = vector.shape_cast %0 : vector<1x16x16x4xf32> to vector<16x16x4xf32>
    %c0_3 = arith.constant 0 : index
    %2 = memref.load %arg1[%c0_3] : memref<1xf32, #tpu.memory_space<smem>>
    %3 = vector.extract_strided_slice %1 {offsets = [1, 0, 0], sizes = [1, 16, 4], strides = [1, 1, 1]} : vector<16x16x4xf32> to vector<1x16x4xf32>
    %4 = vector.extract_strided_slice %1 {offsets = [14, 0, 0], sizes = [1, 16, 4], strides = [1, 1, 1]} : vector<16x16x4xf32> to vector<1x16x4xf32>
    %5 = tpu.concatenate %3, %1, %4 in 0 : vector<1x16x4xf32>, vector<16x16x4xf32>, vector<1x16x4xf32> -> vector<18x16x4xf32>
    %6 = vector.extract_strided_slice %5 {offsets = [0, 1, 0], sizes = [18, 1, 4], strides = [1, 1, 1]} : vector<18x16x4xf32> to vector<18x1x4xf32>
    %7 = vector.extract_strided_slice %5 {offsets = [0, 14, 0], sizes = [18, 1, 4], strides = [1, 1, 1]} : vector<18x16x4xf32> to vector<18x1x4xf32>
    %8 = tpu.concatenate %6, %5, %7 in 1 : vector<18x1x4xf32>, vector<18x16x4xf32>, vector<18x1x4xf32> -> vector<18x18x4xf32>
    %9 = vector.extract_strided_slice %8 {offsets = [0, 0, 0], sizes = [16, 18, 4], strides = [1, 1, 1]} : vector<18x18x4xf32> to vector<16x18x4xf32>
    %10 = vector.extract_strided_slice %9 {offsets = [0, 0, 0], sizes = [16, 16, 4], strides = [1, 1, 1]} : vector<16x18x4xf32> to vector<16x16x4xf32>
    %11 = vector.extract_strided_slice %9 {offsets = [0, 1, 0], sizes = [16, 16, 4], strides = [1, 1, 1]} : vector<16x18x4xf32> to vector<16x16x4xf32>
    %12 = vector.extract_strided_slice %9 {offsets = [0, 2, 0], sizes = [16, 16, 4], strides = [1, 1, 1]} : vector<16x18x4xf32> to vector<16x16x4xf32>
    %13 = tpu.concatenate %10, %11, %12 in 2 : vector<16x16x4xf32>, vector<16x16x4xf32>, vector<16x16x4xf32> -> vector<16x16x12xf32>
    %14 = vector.extract_strided_slice %8 {offsets = [1, 0, 0], sizes = [16, 18, 4], strides = [1, 1, 1]} : vector<18x18x4xf32> to vector<16x18x4xf32>
    %15 = vector.extract_strided_slice %14 {offsets = [0, 0, 0], sizes = [16, 16, 4], strides = [1, 1, 1]} : vector<16x18x4xf32> to vector<16x16x4xf32>
    %16 = vector.extract_strided_slice %14 {offsets = [0, 1, 0], sizes = [16, 16, 4], strides = [1, 1, 1]} : vector<16x18x4xf32> to vector<16x16x4xf32>
    %17 = vector.extract_strided_slice %14 {offsets = [0, 2, 0], sizes = [16, 16, 4], strides = [1, 1, 1]} : vector<16x18x4xf32> to vector<16x16x4xf32>
    %18 = tpu.concatenate %15, %16, %17 in 2 : vector<16x16x4xf32>, vector<16x16x4xf32>, vector<16x16x4xf32> -> vector<16x16x12xf32>
    %19 = vector.extract_strided_slice %8 {offsets = [2, 0, 0], sizes = [16, 18, 4], strides = [1, 1, 1]} : vector<18x18x4xf32> to vector<16x18x4xf32>
    %20 = vector.extract_strided_slice %19 {offsets = [0, 0, 0], sizes = [16, 16, 4], strides = [1, 1, 1]} : vector<16x18x4xf32> to vector<16x16x4xf32>
    %21 = vector.extract_strided_slice %19 {offsets = [0, 1, 0], sizes = [16, 16, 4], strides = [1, 1, 1]} : vector<16x18x4xf32> to vector<16x16x4xf32>
    %22 = vector.extract_strided_slice %19 {offsets = [0, 2, 0], sizes = [16, 16, 4], strides = [1, 1, 1]} : vector<16x18x4xf32> to vector<16x16x4xf32>
    %23 = tpu.concatenate %20, %21, %22 in 2 : vector<16x16x4xf32>, vector<16x16x4xf32>, vector<16x16x4xf32> -> vector<16x16x12xf32>
    %24 = tpu.concatenate %13, %18, %23 in 2 : vector<16x16x12xf32>, vector<16x16x12xf32>, vector<16x16x12xf32> -> vector<16x16x36xf32>
    %25 = vector.shape_cast %24 : vector<16x16x36xf32> to vector<256x36xf32>
    %c0_4 = arith.constant 0 : index
    %c0_5 = arith.constant 0 : index
    %26 = vector.load %arg3[%c0_4, %c0_5] : memref<36x4xf32, #tpu.memory_space<vmem>>, vector<36x4xf32>
    %cst = arith.constant dense<0.000000e+00> : vector<256x4xf32>
    %27 = tpu.matmul %25, %26, %cst {dimension_numbers = #tpu.dot_dimension_numbers<[1], [0], [0], [1], [0, 0, 1, 1], [], []>} : vector<256x36xf32>, vector<36x4xf32>, vector<256x4xf32> -> vector<256x4xf32>
    %c0_6 = arith.constant 0 : index
    %c0_7 = arith.constant 0 : index
    %28 = vector.load %arg4[%c0_6, %c0_7] : memref<1x4xf32, #tpu.memory_space<vmem>>, vector<1x4xf32>
    %29 = vector.broadcast %28 : vector<1x4xf32> to vector<256x4xf32>
    %30 = arith.addf %27, %29 : vector<256x4xf32>
    %cst_8 = arith.constant 0.000000e+00 : f32
    %31 = vector.broadcast %cst_8 : f32 to vector<256x4xf32>
    %32 = arith.cmpf ogt, %30, %31 : vector<256x4xf32>
    %33 = vector.broadcast %2 : f32 to vector<256x4xf32>
    %34 = arith.mulf %33, %30 : vector<256x4xf32>
    %35 = arith.select %32, %30, %34 : vector<256x4xi1>, vector<256x4xf32>
    %36 = vector.shape_cast %35 : vector<256x4xf32> to vector<16x16x4xf32>
    %37 = vector.extract_strided_slice %36 {offsets = [1, 0, 0], sizes = [1, 16, 4], strides = [1, 1, 1]} : vector<16x16x4xf32> to vector<1x16x4xf32>
    %38 = vector.extract_strided_slice %36 {offsets = [14, 0, 0], sizes = [1, 16, 4], strides = [1, 1, 1]} : vector<16x16x4xf32> to vector<1x16x4xf32>
    %39 = tpu.concatenate %37, %36, %38 in 0 : vector<1x16x4xf32>, vector<16x16x4xf32>, vector<1x16x4xf32> -> vector<18x16x4xf32>
    %40 = vector.extract_strided_slice %39 {offsets = [0, 1, 0], sizes = [18, 1, 4], strides = [1, 1, 1]} : vector<18x16x4xf32> to vector<18x1x4xf32>
    %41 = vector.extract_strided_slice %39 {offsets = [0, 14, 0], sizes = [18, 1, 4], strides = [1, 1, 1]} : vector<18x16x4xf32> to vector<18x1x4xf32>
    %42 = tpu.concatenate %40, %39, %41 in 1 : vector<18x1x4xf32>, vector<18x16x4xf32>, vector<18x1x4xf32> -> vector<18x18x4xf32>
    %43 = vector.extract_strided_slice %42 {offsets = [0, 0, 0], sizes = [16, 18, 4], strides = [1, 1, 1]} : vector<18x18x4xf32> to vector<16x18x4xf32>
    %44 = vector.extract_strided_slice %43 {offsets = [0, 0, 0], sizes = [16, 16, 4], strides = [1, 1, 1]} : vector<16x18x4xf32> to vector<16x16x4xf32>
    %45 = vector.extract_strided_slice %43 {offsets = [0, 1, 0], sizes = [16, 16, 4], strides = [1, 1, 1]} : vector<16x18x4xf32> to vector<16x16x4xf32>
    %46 = vector.extract_strided_slice %43 {offsets = [0, 2, 0], sizes = [16, 16, 4], strides = [1, 1, 1]} : vector<16x18x4xf32> to vector<16x16x4xf32>
    %47 = tpu.concatenate %44, %45, %46 in 2 : vector<16x16x4xf32>, vector<16x16x4xf32>, vector<16x16x4xf32> -> vector<16x16x12xf32>
    %48 = vector.extract_strided_slice %42 {offsets = [1, 0, 0], sizes = [16, 18, 4], strides = [1, 1, 1]} : vector<18x18x4xf32> to vector<16x18x4xf32>
    %49 = vector.extract_strided_slice %48 {offsets = [0, 0, 0], sizes = [16, 16, 4], strides = [1, 1, 1]} : vector<16x18x4xf32> to vector<16x16x4xf32>
    %50 = vector.extract_strided_slice %48 {offsets = [0, 1, 0], sizes = [16, 16, 4], strides = [1, 1, 1]} : vector<16x18x4xf32> to vector<16x16x4xf32>
    %51 = vector.extract_strided_slice %48 {offsets = [0, 2, 0], sizes = [16, 16, 4], strides = [1, 1, 1]} : vector<16x18x4xf32> to vector<16x16x4xf32>
    %52 = tpu.concatenate %49, %50, %51 in 2 : vector<16x16x4xf32>, vector<16x16x4xf32>, vector<16x16x4xf32> -> vector<16x16x12xf32>
    %53 = vector.extract_strided_slice %42 {offsets = [2, 0, 0], sizes = [16, 18, 4], strides = [1, 1, 1]} : vector<18x18x4xf32> to vector<16x18x4xf32>
    %54 = vector.extract_strided_slice %53 {offsets = [0, 0, 0], sizes = [16, 16, 4], strides = [1, 1, 1]} : vector<16x18x4xf32> to vector<16x16x4xf32>
    %55 = vector.extract_strided_slice %53 {offsets = [0, 1, 0], sizes = [16, 16, 4], strides = [1, 1, 1]} : vector<16x18x4xf32> to vector<16x16x4xf32>
    %56 = vector.extract_strided_slice %53 {offsets = [0, 2, 0], sizes = [16, 16, 4], strides = [1, 1, 1]} : vector<16x18x4xf32> to vector<16x16x4xf32>
    %57 = tpu.concatenate %54, %55, %56 in 2 : vector<16x16x4xf32>, vector<16x16x4xf32>, vector<16x16x4xf32> -> vector<16x16x12xf32>
    %58 = tpu.concatenate %47, %52, %57 in 2 : vector<16x16x12xf32>, vector<16x16x12xf32>, vector<16x16x12xf32> -> vector<16x16x36xf32>
    %59 = vector.shape_cast %58 : vector<16x16x36xf32> to vector<256x36xf32>
    %c0_9 = arith.constant 0 : index
    %c0_10 = arith.constant 0 : index
    %60 = vector.load %arg5[%c0_9, %c0_10] : memref<36x4xf32, #tpu.memory_space<vmem>>, vector<36x4xf32>
    %cst_11 = arith.constant dense<0.000000e+00> : vector<256x4xf32>
    %61 = tpu.matmul %59, %60, %cst_11 {dimension_numbers = #tpu.dot_dimension_numbers<[1], [0], [0], [1], [0, 0, 1, 1], [], []>} : vector<256x36xf32>, vector<36x4xf32>, vector<256x4xf32> -> vector<256x4xf32>
    %c0_12 = arith.constant 0 : index
    %c0_13 = arith.constant 0 : index
    %62 = vector.load %arg6[%c0_12, %c0_13] : memref<1x4xf32, #tpu.memory_space<vmem>>, vector<1x4xf32>
    %63 = vector.broadcast %62 : vector<1x4xf32> to vector<256x4xf32>
    %64 = arith.addf %61, %63 : vector<256x4xf32>
    %cst_14 = arith.constant 1.000000e-01 : f32
    %65 = vector.broadcast %cst_14 : f32 to vector<256x4xf32>
    %66 = arith.mulf %64, %65 : vector<256x4xf32>
    %67 = vector.shape_cast %1 : vector<16x16x4xf32> to vector<256x4xf32>
    %68 = arith.addf %66, %67 : vector<256x4xf32>
    %c0_15 = arith.constant 0 : index
    %c0_16 = arith.constant 0 : index
    %c0_17 = arith.constant 0 : index
    %69 = vector.load %arg7[%c0_15, %c0_16, %c0_17] : memref<1x256x4xf32, #tpu.memory_space<vmem>>, vector<1x256x4xf32>
    %70 = vector.shape_cast %69 : vector<1x256x4xf32> to vector<256x4xf32>
    %71 = vector.shape_cast %68 : vector<256x4xf32> to vector<1x256x4xf32>
    tpu.vector_store %arg7[%c0_15, %c0_16, %c0_17], %71 {strides = array<i32>} : memref<1x256x4xf32, #tpu.memory_space<vmem>>, vector<1x256x4xf32>,
    return
  }
  func.func @transform_0(%arg0: i32) -> i32 {
    %c0_i32 = arith.constant 0 : i32
    %c0_i32_0 = arith.constant 0 : i32
    return %c0_i32 : i32
  }
  func.func @transform_1(%arg0: i32) -> (i32, i32, i32, i32) {
    %c0_i32 = arith.constant 0 : i32
    %c0_i32_0 = arith.constant 0 : i32
    %c0_i32_1 = arith.constant 0 : i32
    %c0_i32_2 = arith.constant 0 : i32
    return %arg0, %c0_i32, %c0_i32_0, %c0_i32_1 : i32, i32, i32, i32
  }
  func.func @transform_2(%arg0: i32) -> (i32, i32) {
    %c0_i32 = arith.constant 0 : i32
    %c0_i32_0 = arith.constant 0 : i32
    %c0_i32_1 = arith.constant 0 : i32
    return %c0_i32, %c0_i32_0 : i32, i32
  }
  func.func @transform_3(%arg0: i32) -> (i32, i32) {
    %c0_i32 = arith.constant 0 : i32
    %c0_i32_0 = arith.constant 0 : i32
    %c0_i32_1 = arith.constant 0 : i32
    return %c0_i32, %c0_i32_0 : i32, i32
  }
  func.func @transform_4(%arg0: i32) -> (i32, i32) {
    %c0_i32 = arith.constant 0 : i32
    %c0_i32_0 = arith.constant 0 : i32
    %c0_i32_1 = arith.constant 0 : i32
    return %c0_i32, %c0_i32_0 : i32, i32
  }
  func.func @transform_5(%arg0: i32) -> (i32, i32) {
    %c0_i32 = arith.constant 0 : i32
    %c0_i32_0 = arith.constant 0 : i32
    %c0_i32_1 = arith.constant 0 : i32
    return %c0_i32, %c0_i32_0 : i32, i32
  }
  func.func @transform_6(%arg0: i32) -> (i32, i32, i32) {
    %c0_i32 = arith.constant 0 : i32
    %c0_i32_0 = arith.constant 0 : i32
    %c0_i32_1 = arith.constant 0 : i32
    return %arg0, %c0_i32, %c0_i32_0 : i32, i32, i32
  }
}

</mosaic_0001>

<llo_original>
// kernel: residual_block_nchw.1
$region0: #{residual_block_nchw.1}
  #allocation0 [shape = 'u32[]', space=smem, size = 0x4, offset = 0x4, fixed_abs, tag = 'smem constant byte address 0x4 - core index']
  #allocation1 [shape = 'u32[72,128]{1,0:T(1,128)}', space=vmem, size = 0x9000, scoped, tag = 'internal scratch']
  #allocation2 [shape = 'f32[1]{0:T(128)S(6)}', space=smem, size = 0x200, scoped, tag = 'scoped memory for residual_block_nchw.1']
  %s0 = inlined_call_operand.<no memory space> [shape: f32[1], index: 0, kind: input, shape index: {}]
  %s1 = inlined_call_operand.vmem [shape: f32[2,16,16,4], index: 1, kind: input, shape index: {}]
  %s2 = inlined_call_operand.vmem [shape: f32[36,4], index: 2, kind: input, shape index: {}]
  %s3 = inlined_call_operand.vmem [shape: f32[1,4], index: 3, kind: input, shape index: {}]
  %s4 = inlined_call_operand.vmem [shape: f32[36,4], index: 4, kind: input, shape index: {}]
  %s5 = inlined_call_operand.vmem [shape: f32[1,4], index: 5, kind: input, shape index: {}]
  %s6 = inlined_call_operand.vmem [shape: f32[2,256,4], index: 6, kind: output, shape index: {}]
  %s7 = sld [smem:[#allocation0]]
  $region57: #{residual_block_nchw.1} parent=0
    _
  %s9 = ssub.s32 1, %s7
  %s10 = scalar_select 0, %s9, %s7
  %11 = sst [smem:[#allocation2]] %s0
  loop: start=0, step=1, limit=4
  $region2: #{residual_block_nchw.1} parent=0 // loop_pre_header
    _
  $region3: #{residual_block_nchw.1} parent=0 // loop_header
    %s13 = sphi 0, %s17
    %p14 = scmp.ge.s32.totalorder %s13, 4
    %s21 = sphi 0, %s21
    %s23 = sphi 0, %s21
    %s24 = sphi 0, %s23
    %s38 = sphi 0, %s24
    %s44 = sphi 0, %s46
    %s47 = sphi 0, %s44
    %s48 = sphi 0, %s47
    %s64 = sphi 0, %s48
    %s68 = sphi 0, %s68
    %s70 = sphi 0, %s68
    %s71 = sphi 0, %s70
    %s85 = sphi 0, %s71
    %s89 = sphi 0, %s89
    %s91 = sphi 0, %s89
    %s92 = sphi 0, %s91
    %s106 = sphi 0, %s92
    %s110 = sphi 0, %s110
    %s112 = sphi 0, %s110
    %s113 = sphi 0, %s112
    %s127 = sphi 0, %s113
    %s131 = sphi 0, %s131
    %s133 = sphi 0, %s131
    %s134 = sphi 0, %s133
    %s148 = sphi 0, %s134
    %s154 = sphi 0, %s156
    %s157 = sphi 0, %s154
    %s158 = sphi 0, %s157
    %s174 = sphi 0, %s158
  $region4: #{residual_block_nchw.1} parent=0 // loop_header_branch
    %16 = sbr.rel (%p14) target = $region8
  $region5: #{residual_block_nchw.1} parent=0 // loop_body
    %s18 = ssub.s32 %s13, 1
    %s19 = ssub.s32 %s13, 2
    %s20 = sadd.s32 %s13, 1
    %s22 = sadd.s32 %s21, 1
    %p25 = scmp.eq.s32.totalorder %s13, 1
    %p26 = scmp.ne.s32.totalorder %s21, %s23
    %p27 = scmp.eq.s32.totalorder %s13, 0
    %p28 = por %p26, %p27
    %p29 = scmp.ne.s32.totalorder %s21, %s23
    %p30 = scmp.eq.s32.totalorder %s18, 1
    %p31 = por %p29, %p30
    %p32 = scmp.ne.s32.totalorder %s23, %s24
    %p33 = scmp.eq.s32.totalorder %s18, 0
    %p34 = por %p32, %p33
    %p35 = scmp.ne.s32.totalorder %s23, %s24
    %p36 = scmp.eq.s32.totalorder %s19, 1
    %p37 = por %p35, %p36
    %p39 = scmp.ne.s32.totalorder %s24, %s38
    %p40 = scmp.eq.s32.totalorder %s19, 0
    %p41 = por %p39, %p40
    %s42 = ssub.s32 %s13, %s20
    %p43 = scmp.eq.s32.totalorder %s42, 0
    %s45 = sadd.s32 %s44, 1
    %s46 = scalar_select %p43, %s44, %s45
    %p49 = pneg %p43
    %p50 = scmp.eq.s32.totalorder %s13, 1
    %p51 = por %p49, %p50
    %p52 = scmp.ne.s32.totalorder %s44, %s47
    %p53 = scmp.eq.s32.totalorder %s13, 0
    %p54 = por %p52, %p53
    %p55 = scmp.ne.s32.totalorder %s44, %s47
    %p56 = scmp.eq.s32.totalorder %s18, 1
    %p57 = por %p55, %p56
    %p58 = scmp.ne.s32.totalorder %s47, %s48
    %p59 = scmp.eq.s32.totalorder %s18, 0
    %p60 = por %p58, %p59
    %p61 = scmp.ne.s32.totalorder %s47, %s48
    %p62 = scmp.eq.s32.totalorder %s19, 1
    %p63 = por %p61, %p62
    %p65 = scmp.ne.s32.totalorder %s48, %s64
    %p66 = scmp.eq.s32.totalorder %s19, 0
    %p67 = por %p65, %p66
    %s69 = sadd.s32 %s68, 1
    %p72 = scmp.eq.s32.totalorder %s13, 1
    %p73 = scmp.ne.s32.totalorder %s68, %s70
    %p74 = scmp.eq.s32.totalorder %s13, 0
    %p75 = por %p73, %p74
    %p76 = scmp.ne.s32.totalorder %s68, %s70
    %p77 = scmp.eq.s32.totalorder %s18, 1
    %p78 = por %p76, %p77
    %p79 = scmp.ne.s32.totalorder %s70, %s71
    %p80 = scmp.eq.s32.totalorder %s18, 0
    %p81 = por %p79, %p80
    %p82 = scmp.ne.s32.totalorder %s70, %s71
    %p83 = scmp.eq.s32.totalorder %s19, 1
    %p84 = por %p82, %p83
    %p86 = scmp.ne.s32.totalorder %s71, %s85
    %p87 = scmp.eq.s32.totalorder %s19, 0
    %p88 = por %p86, %p87
    %s90 = sadd.s32 %s89, 1
    %p93 = scmp.eq.s32.totalorder %s13, 1
    %p94 = scmp.ne.s32.totalorder %s89, %s91
    %p95 = scmp.eq.s32.totalorder %s13, 0
    %p96 = por %p94, %p95
    %p97 = scmp.ne.s32.totalorder %s89, %s91
    %p98 = scmp.eq.s32.totalorder %s18, 1
    %p99 = por %p97, %p98
    %p100 = scmp.ne.s32.totalorder %s91, %s92
    %p101 = scmp.eq.s32.totalorder %s18, 0
    %p102 = por %p100, %p101
    %p103 = scmp.ne.s32.totalorder %s91, %s92
    %p104 = scmp.eq.s32.totalorder %s19, 1
    %p105 = por %p103, %p104
    %p107 = scmp.ne.s32.totalorder %s92, %s106
    %p108 = scmp.eq.s32.totalorder %s19, 0
    %p109 = por %p107, %p108
    %s111 = sadd.s32 %s110, 1
    %p114 = scmp.eq.s32.totalorder %s13, 1
    %p115 = scmp.ne.s32.totalorder %s110, %s112
    %p116 = scmp.eq.s32.totalorder %s13, 0
    %p117 = por %p115, %p116
    %p118 = scmp.ne.s32.totalorder %s110, %s112
    %p119 = scmp.eq.s32.totalorder %s18, 1
    %p120 = por %p118, %p119
    %p121 = scmp.ne.s32.totalorder %s112, %s113
    %p122 = scmp.eq.s32.totalorder %s18, 0
    %p123 = por %p121, %p122
    %p124 = scmp.ne.s32.totalorder %s112, %s113
    %p125 = scmp.eq.s32.totalorder %s19, 1
    %p126 = por %p124, %p125
    %p128 = scmp.ne.s32.totalorder %s113, %s127
    %p129 = scmp.eq.s32.totalorder %s19, 0
    %p130 = por %p128, %p129
    %s132 = sadd.s32 %s131, 1
    %p135 = scmp.eq.s32.totalorder %s13, 1
    %p136 = scmp.ne.s32.totalorder %s131, %s133
    %p137 = scmp.eq.s32.totalorder %s13, 0
    %p138 = por %p136, %p137
    %p139 = scmp.ne.s32.totalorder %s131, %s133
    %p140 = scmp.eq.s32.totalorder %s18, 1
    %p141 = por %p139, %p140
    %p142 = scmp.ne.s32.totalorder %s133, %s134
    %p143 = scmp.eq.s32.totalorder %s18, 0
    %p144 = por %p142, %p143
    %p145 = scmp.ne.s32.totalorder %s133, %s134
    %p146 = scmp.eq.s32.totalorder %s19, 1
    %p147 = por %p145, %p146
    %p149 = scmp.ne.s32.totalorder %s134, %s148
    %p150 = scmp.eq.s32.totalorder %s19, 0
    %p151 = por %p149, %p150
    %s152 = ssub.s32 %s13, %s20
    %p153 = scmp.eq.s32.totalorder %s152, 0
    %s155 = sadd.s32 %s154, 1
    %s156 = scalar_select %p153, %s154, %s155
    %p159 = pneg %p153
    %p160 = scmp.eq.s32.totalorder %s13, 1
    %p161 = por %p159, %p160
    %p162 = scmp.ne.s32.totalorder %s154, %s157
    %p163 = scmp.eq.s32.totalorder %s13, 0
    %p164 = por %p162, %p163
    %p165 = scmp.ne.s32.totalorder %s154, %s157
    %p166 = scmp.eq.s32.totalorder %s18, 1
    %p167 = por %p165, %p166
    %p168 = scmp.ne.s32.totalorder %s157, %s158
    %p169 = scmp.eq.s32.totalorder %s18, 0
    %p170 = por %p168, %p169
    %p171 = scmp.ne.s32.totalorder %s157, %s158
    %p172 = scmp.eq.s32.totalorder %s19, 1
    %p173 = por %p171, %p172
    %p175 = scmp.ne.s32.totalorder %s158, %s174
    %p176 = scmp.eq.s32.totalorder %s19, 0
    %p177 = por %p175, %p176
    %p178 = scmp.le.s32.totalorder 1, %s13
    %p179 = scmp.lt.s32.totalorder %s13, 3
    %p180 = pnand %p178, %p179
    %p181 = pneg %p180
    // Predicated region
    $region9: #{residual_block_nchw.1} parent=5 // pred_check
      _
    $region10: #{residual_block_nchw.1} parent=5 // pred_check_branch
      %183 = sbr.rel (%p180) target = $region12
    $region11: #{residual_block_nchw.1} parent=5 // pred_region
      %s184 = ssub.s32 %s13, 1
      // Predicated region
      $region13: #{residual_block_nchw.1} parent=11 // pred_check
        %p185 = pneg %p34
      $region14: #{residual_block_nchw.1} parent=11 // pred_check_branch
        %187 = sbr.rel (%p185) target = $region16
      $region15: #{residual_block_nchw.1} parent=11 // pred_region
        _
      $region16: #{residual_block_nchw.1} parent=11 // pred_fallthru
        _
      // Predicated region
      $region17: #{residual_block_nchw.1} parent=11 // pred_check
        %p188 = pneg %p81
      $region18: #{residual_block_nchw.1} parent=11 // pred_check_branch
        %190 = sbr.rel (%p188) target = $region20
      $region19: #{residual_block_nchw.1} parent=11 // pred_region
        _
      $region20: #{residual_block_nchw.1} parent=11 // pred_fallthru
        _
      // Predicated region
      $region21: #{residual_block_nchw.1} parent=11 // pred_check
        %p191 = pneg %p102
      $region22: #{residual_block_nchw.1} parent=11 // pred_check_branch
        %193 = sbr.rel (%p191) target = $region24
      $region23: #{residual_block_nchw.1} parent=11 // pred_region
        _
      $region24: #{residual_block_nchw.1} parent=11 // pred_fallthru
        _
      // Predicated region
      $region25: #{residual_block_nchw.1} parent=11 // pred_check
        %p194 = pneg %p123
      $region26: #{residual_block_nchw.1} parent=11 // pred_check_branch
        %196 = sbr.rel (%p194) target = $region28
      $region27: #{residual_block_nchw.1} parent=11 // pred_region
        _
      $region28: #{residual_block_nchw.1} parent=11 // pred_fallthru
        _
      // Predicated region
      $region29: #{residual_block_nchw.1} parent=11 // pred_check
        %p197 = pneg %p144
      $region30: #{residual_block_nchw.1} parent=11 // pred_check_branch
        %199 = sbr.rel (%p197) target = $region32
      $region31: #{residual_block_nchw.1} parent=11 // pred_region
        _
      $region32: #{residual_block_nchw.1} parent=11 // pred_fallthru
        _
    $region12: #{residual_block_nchw.1} parent=5 // pred_fallthru
      _
    %p200 = scmp.lt.s32.totalorder %s13, 2
    // Predicated region
    $region33: #{residual_block_nchw.1} parent=5 // pred_check
      %p201 = pneg %p200
    $region34: #{residual_block_nchw.1} parent=5 // pred_check_branch
      %203 = sbr.rel (%p201) target = $region36
    $region35: #{residual_block_nchw.1} parent=5 // pred_region
      // Predicated region
      $region37: #{residual_block_nchw.1} parent=35 // pred_check
        %p204 = pneg %p54
      $region38: #{residual_block_nchw.1} parent=35 // pred_check_branch
        %206 = sbr.rel (%p204) target = $region40
      $region39: #{residual_block_nchw.1} parent=35 // pred_region
        %p207 = scmp.lt.s32.totalorder %s13, 1
        %s208 = scalar_select %p207, %s13, 1
        %s209 = smul.addr %s208, 32
        %s210 = smul.addr %s209, 8
        %s211 = scalar_lea.vmem %s1, %s210
      $region40: #{residual_block_nchw.1} parent=35 // pred_fallthru
        _
    $region36: #{residual_block_nchw.1} parent=5 // pred_fallthru
      _
    %p212 = scmp.le.s32.totalorder 1, %s13
    %p213 = scmp.lt.s32.totalorder %s13, 3
    %p214 = pnand %p212, %p213
    %p215 = pneg %p214
    // Predicated region
    $region41: #{residual_block_nchw.1} parent=5 // pred_check
      _
    $region42: #{residual_block_nchw.1} parent=5 // pred_check_branch
      %217 = sbr.rel (%p214) target = $region44
    $region43: #{residual_block_nchw.1} parent=5 // pred_region
      %s218 = ssub.s32 %s13, 1
      %p219 = pneg %p34
      %p220 = pneg %p31
      %p221 = scmp.lt.s32.totalorder %s18, 1
      %s222 = scalar_select %p221, %s18, 1
      %s223 = smul.addr %s222, 32
      %s224 = smul.addr %s223, 8
      %s225 = scalar_lea.vmem %s1, %s224
      %p226 = pneg %p60
      %p227 = pneg %p57
      %p228 = pneg %p81
      %p229 = pneg %p78
      %p230 = pneg %p102
      %p231 = pneg %p99
      %p232 = pneg %p123
      %p233 = pneg %p120
      %p234 = pneg %p144
      %p235 = pneg %p141
      %p236 = pneg %p170
      %p237 = pneg %p167
      %p238 = scmp.lt.s32.totalorder %s18, 1
      %s239 = scalar_select %p238, %s18, 1
      %s240 = smul.addr %s239, 32
      %s241 = smul.addr %s240, 8
      %s242 = scalar_lea.vmem %s6, %s241
      %p243 = scmp.lt.s32.totalorder %s18, 1
      %s244 = scalar_select %p243, %s18, 1
      %s245 = smul.addr %s244, 32
      %s246 = smul.addr %s245, 8
      %s247 = scalar_lea.vmem %s1, %s246
      %p248 = scmp.lt.s32.totalorder %s18, 1
      %s249 = scalar_select %p248, %s18, 1
      %s250 = smul.addr %s249, 32
      %s251 = smul.addr %s250, 8
      %s252 = scalar_lea.vmem %s6, %s251
      %v253 = vld [vmem:[%s247] sm:$0xff]
      %v254 = vld [vmem:[%s247 + $0x8] sm:$0xff]
      %v255 = vld [vmem:[%s247 + $0x10] sm:$0xff]
      %v256 = vld [vmem:[%s247 + $0x18] sm:$0xff]
      %v257 = vld [vmem:[%s247 + $0x20] sm:$0xff]
      %v258 = vld [vmem:[%s247 + $0x28] sm:$0xff]
      %v259 = vld [vmem:[%s247 + $0x30] sm:$0xff]
      %v260 = vld [vmem:[%s247 + $0x38] sm:$0xff]
      %v261 = vld [vmem:[%s247 + $0x40] sm:$0xff]
      %v262 = vld [vmem:[%s247 + $0x48] sm:$0xff]
      %v263 = vld [vmem:[%s247 + $0x50] sm:$0xff]
      %v264 = vld [vmem:[%s247 + $0x58] sm:$0xff]
      %v265 = vld [vmem:[%s247 + $0x60] sm:$0xff]
      %v266 = vld [vmem:[%s247 + $0x68] sm:$0xff]
      %v267 = vld [vmem:[%s247 + $0x70] sm:$0xff]
      %v268 = vld [vmem:[%s247 + $0x78] sm:$0xff]
      %v269 = vld [vmem:[%s247 + $0x80] sm:$0xff]
      %v270 = vld [vmem:[%s247 + $0x88] sm:$0xff]
      %v271 = vld [vmem:[%s247 + $0x90] sm:$0xff]
      %v272 = vld [vmem:[%s247 + $0x98] sm:$0xff]
      %v273 = vld [vmem:[%s247 + $0xa0] sm:$0xff]
      %v274 = vld [vmem:[%s247 + $0xa8] sm:$0xff]
      %v275 = vld [vmem:[%s247 + $0xb0] sm:$0xff]
      %v276 = vld [vmem:[%s247 + $0xb8] sm:$0xff]
      %v277 = vld [vmem:[%s247 + $0xc0] sm:$0xff]
      %v278 = vld [vmem:[%s247 + $0xc8] sm:$0xff]
      %v279 = vld [vmem:[%s247 + $0xd0] sm:$0xff]
      %v280 = vld [vmem:[%s247 + $0xd8] sm:$0xff]
      %v281 = vld [vmem:[%s247 + $0xe0] sm:$0xff]
      %v282 = vld [vmem:[%s247 + $0xe8] sm:$0xff]
      %v283 = vld [vmem:[%s247 + $0xf0] sm:$0xff]
      %v284 = vld [vmem:[%s247 + $0xf8] sm:$0xff]
      %s285 = sld [smem:[#allocation2]]
      %v302 = vrot.slane %v255, 1
      %v303 = vrot.slane %v253, 1
      %v304 = vrot.slane %v257, 1
      %v305 = vrot.slane %v259, 1
      %v306 = vrot.slane %v261, 1
      %v307 = vrot.slane %v263, 1
      %v308 = vrot.slane %v265, 1
      %v309 = vrot.slane %v267, 1
      %v310 = vrot.slane %v269, 1
      %v311 = vrot.slane %v271, 1
      %v312 = vrot.slane %v273, 1
      %v313 = vrot.slane %v275, 1
      %v314 = vrot.slane %v277, 1
      %v315 = vrot.slane %v279, 1
      %v316 = vrot.slane %v281, 1
      %v317 = vrot.slane %v283, 1
      %vm350 = vcmask 1040384
      %v351 = vrot.slane %v255, 7
      %v352 = vrot.slane %v256, 7
      %v353 = vsel %vm350, %v351, %v352
      %v354 = vrot.slane %v253, 7
      %v355 = vrot.slane %v254, 7
      %v356 = vsel %vm350, %v354, %v355
      %v357 = vrot.slane %v257, 7
      %v358 = vrot.slane %v258, 7
      %v359 = vsel %vm350, %v357, %v358
      %v360 = vrot.slane %v259, 7
      %v361 = vrot.slane %v260, 7
      %v362 = vsel %vm350, %v360, %v361
      %v363 = vrot.slane %v261, 7
      %v364 = vrot.slane %v262, 7
      %v365 = vsel %vm350, %v363, %v364
      %v366 = vrot.slane %v263, 7
      %v367 = vrot.slane %v264, 7
      %v368 = vsel %vm350, %v366, %v367
      %v369 = vrot.slane %v265, 7
      %v370 = vrot.slane %v266, 7
      %v371 = vsel %vm350, %v369, %v370
      %v372 = vrot.slane %v267, 7
      %v373 = vrot.slane %v268, 7
      %v374 = vsel %vm350, %v372, %v373
      %v375 = vrot.slane %v269, 7
      %v376 = vrot.slane %v270, 7
      %v377 = vsel %vm350, %v375, %v376
      %v378 = vrot.slane %v271, 7
      %v379 = vrot.slane %v272, 7
      %v380 = vsel %vm350, %v378, %v379
      %v381 = vrot.slane %v273, 7
      %v382 = vrot.slane %v274, 7
      %v383 = vsel %vm350, %v381, %v382
      %v384 = vrot.slane %v275, 7
      %v385 = vrot.slane %v276, 7
      %v386 = vsel %vm350, %v384, %v385
      %v387 = vrot.slane %v277, 7
      %v388 = vrot.slane %v278, 7
      %v389 = vsel %vm350, %v387, %v388
      %v390 = vrot.slane %v279, 7
      %v391 = vrot.slane %v280, 7
      %v392 = vsel %vm350, %v390, %v391
      %v393 = vrot.slane %v281, 7
      %v394 = vrot.slane %v282, 7
      %v395 = vsel %vm350, %v393, %v394
      %v396 = vrot.slane %v283, 7
      %v397 = vrot.slane %v284, 7
      %v398 = vsel %vm350, %v396, %v397
      %v447 = vrot.slane %v256, 5
      %v448 = vrot.slane %v254, 5
      %v449 = vrot.slane %v258, 5
      %v450 = vrot.slane %v260, 5
      %v451 = vrot.slane %v262, 5
      %v452 = vrot.slane %v264, 5
      %v453 = vrot.slane %v266, 5
      %v454 = vrot.slane %v268, 5
      %v455 = vrot.slane %v270, 5
      %v456 = vrot.slane %v272, 5
      %v457 = vrot.slane %v274, 5
      %v458 = vrot.slane %v276, 5
      %v459 = vrot.slane %v278, 5
      %v460 = vrot.slane %v280, 5
      %v461 = vrot.slane %v282, 5
      %v462 = vrot.slane %v284, 5
      %v479 = vsel %vm350, %v302, %v351
      %v480 = vsel %vm350, %v303, %v354
      %v481 = vsel %vm350, %v304, %v357
      %v482 = vsel %vm350, %v305, %v360
      %v483 = vsel %vm350, %v306, %v363
      %v484 = vsel %vm350, %v307, %v366
      %v485 = vsel %vm350, %v308, %v369
      %v486 = vsel %vm350, %v309, %v372
      %v487 = vsel %vm350, %v310, %v375
      %v488 = vsel %vm350, %v311, %v378
      %v489 = vsel %vm350, %v312, %v381
      %v490 = vsel %vm350, %v313, %v384
      %v491 = vsel %vm350, %v314, %v387
      %v492 = vsel %vm350, %v315, %v390
      %v493 = vsel %vm350, %v316, %v393
      %v494 = vsel %vm350, %v317, %v396
      %v495 = vsel %vm350, %v352, %v447
      %v496 = vsel %vm350, %v355, %v448
      %v497 = vsel %vm350, %v358, %v449
      %v498 = vsel %vm350, %v361, %v450
      %v499 = vsel %vm350, %v364, %v451
      %v500 = vsel %vm350, %v367, %v452
      %v501 = vsel %vm350, %v370, %v453
      %v502 = vsel %vm350, %v373, %v454
      %v503 = vsel %vm350, %v376, %v455
      %v504 = vsel %vm350, %v379, %v456
      %v505 = vsel %vm350, %v382, %v457
      %v506 = vsel %vm350, %v385, %v458
      %v507 = vsel %vm350, %v388, %v459
      %v508 = vsel %vm350, %v391, %v460
      %v509 = vsel %vm350, %v394, %v461
      %v510 = vsel %vm350, %v397, %v462
      %vm541 = vcmask 1046528
      %v542 = vrot.slane %v479, 1
      %v543 = vrot.slane %v353, 1
      %v544 = vsel %vm541, %v542, %v543
      %v545 = vrot.slane %v495, 1
      %v546 = vsel %vm541, %v543, %v545
      %v547 = vrot.slane %v480, 1
      %v548 = vrot.slane %v356, 1
      %v549 = vsel %vm541, %v547, %v548
      %v550 = vrot.slane %v496, 1
      %v551 = vsel %vm541, %v548, %v550
      %v552 = vrot.slane %v481, 1
      %v553 = vrot.slane %v359, 1
      %v554 = vsel %vm541, %v552, %v553
      %v555 = vrot.slane %v497, 1
      %v556 = vsel %vm541, %v553, %v555
      %v557 = vrot.slane %v482, 1
      %v558 = vrot.slane %v362, 1
      %v559 = vsel %vm541, %v557, %v558
      %v560 = vrot.slane %v498, 1
      %v561 = vsel %vm541, %v558, %v560
      %v562 = vrot.slane %v483, 1
      %v563 = vrot.slane %v365, 1
      %v564 = vsel %vm541, %v562, %v563
      %v565 = vrot.slane %v499, 1
      %v566 = vsel %vm541, %v563, %v565
      %v567 = vrot.slane %v484, 1
      %v568 = vrot.slane %v368, 1
      %v569 = vsel %vm541, %v567, %v568
      %v570 = vrot.slane %v500, 1
      %v571 = vsel %vm541, %v568, %v570
      %v572 = vrot.slane %v485, 1
      %v573 = vrot.slane %v371, 1
      %v574 = vsel %vm541, %v572, %v573
      %v575 = vrot.slane %v501, 1
      %v576 = vsel %vm541, %v573, %v575
      %v577 = vrot.slane %v486, 1
      %v578 = vrot.slane %v374, 1
      %v579 = vsel %vm541, %v577, %v578
      %v580 = vrot.slane %v502, 1
      %v581 = vsel %vm541, %v578, %v580
      %v582 = vrot.slane %v487, 1
      %v583 = vrot.slane %v377, 1
      %v584 = vsel %vm541, %v582, %v583
      %v585 = vrot.slane %v503, 1
      %v586 = vsel %vm541, %v583, %v585
      %v587 = vrot.slane %v488, 1
      %v588 = vrot.slane %v380, 1
      %v589 = vsel %vm541, %v587, %v588
      %v590 = vrot.slane %v504, 1
      %v591 = vsel %vm541, %v588, %v590
      %v592 = vrot.slane %v489, 1
      %v593 = vrot.slane %v383, 1
      %v594 = vsel %vm541, %v592, %v593
      %v595 = vrot.slane %v505, 1
      %v596 = vsel %vm541, %v593, %v595
      %v597 = vrot.slane %v490, 1
      %v598 = vrot.slane %v386, 1
      %v599 = vsel %vm541, %v597, %v598
      %v600 = vrot.slane %v506, 1
      %v601 = vsel %vm541, %v598, %v600
      %v602 = vrot.slane %v491, 1
      %v603 = vrot.slane %v389, 1
      %v604 = vsel %vm541, %v602, %v603
      %v605 = vrot.slane %v507, 1
      %v606 = vsel %vm541, %v603, %v605
      %v607 = vrot.slane %v492, 1
      %v608 = vrot.slane %v392, 1
      %v609 = vsel %vm541, %v607, %v608
      %v610 = vrot.slane %v508, 1
      %v611 = vsel %vm541, %v608, %v610
      %v612 = vrot.slane %v493, 1
      %v613 = vrot.slane %v395, 1
      %v614 = vsel %vm541, %v612, %v613
      %v615 = vrot.slane %v509, 1
      %v616 = vsel %vm541, %v613, %v615
      %617 = vrot.lane.b32.xlu0 %v544, 4
      %v618 = vpop.permute.xlu0 %617
      %619 = vrot.lane.b32.xlu0 %v546, 4
      %v620 = vpop.permute.xlu0 %619
      %621 = vrot.lane.b32.xlu0 %v549, 4
      %v622 = vpop.permute.xlu0 %621
      %623 = vrot.lane.b32.xlu0 %v551, 4
      %v624 = vpop.permute.xlu0 %623
      %625 = vrot.lane.b32.xlu0 %v554, 4
      %v626 = vpop.permute.xlu0 %625
      %627 = vrot.lane.b32.xlu0 %v556, 4
      %v628 = vpop.permute.xlu0 %627
      %629 = vrot.lane.b32.xlu0 %v559, 4
      %v630 = vpop.permute.xlu0 %629
      %631 = vrot.lane.b32.xlu0 %v561, 4
      %v632 = vpop.permute.xlu0 %631
      %633 = vrot.lane.b32.xlu0 %v564, 4
      %v634 = vpop.permute.xlu0 %633
      %635 = vrot.lane.b32.xlu0 %v566, 4
      %v636 = vpop.permute.xlu0 %635
      %637 = vrot.lane.b32.xlu0 %v569, 4
      %v638 = vpop.permute.xlu0 %637
      %639 = vrot.lane.b32.xlu0 %v571, 4
      %v640 = vpop.permute.xlu0 %639
      %641 = vrot.lane.b32.xlu0 %v574, 4
      %v642 = vpop.permute.xlu0 %641
      %643 = vrot.lane.b32.xlu0 %v576, 4
      %v644 = vpop.permute.xlu0 %643
      %645 = vrot.lane.b32.xlu0 %v579, 4
      %v646 = vpop.permute.xlu0 %645
      %647 = vrot.lane.b32.xlu0 %v581, 4
      %v648 = vpop.permute.xlu0 %647
      %649 = vrot.lane.b32.xlu0 %v584, 4
      %v650 = vpop.permute.xlu0 %649
      %651 = vrot.lane.b32.xlu0 %v586, 4
      %v652 = vpop.permute.xlu0 %651
      %653 = vrot.lane.b32.xlu0 %v589, 4
      %v654 = vpop.permute.xlu0 %653
      %655 = vrot.lane.b32.xlu0 %v591, 4
      %v656 = vpop.permute.xlu0 %655
      %657 = vrot.lane.b32.xlu0 %v594, 4
      %v658 = vpop.permute.xlu0 %657
      %659 = vrot.lane.b32.xlu0 %v596, 4
      %v660 = vpop.permute.xlu0 %659
      %661 = vrot.lane.b32.xlu0 %v599, 4
      %v662 = vpop.permute.xlu0 %661
      %663 = vrot.lane.b32.xlu0 %v601, 4
      %v664 = vpop.permute.xlu0 %663
      %665 = vrot.lane.b32.xlu0 %v604, 4
      %v666 = vpop.permute.xlu0 %665
      %667 = vrot.lane.b32.xlu0 %v606, 4
      %v668 = vpop.permute.xlu0 %667
      %669 = vrot.lane.b32.xlu0 %v609, 4
      %v670 = vpop.permute.xlu0 %669
      %671 = vrot.lane.b32.xlu0 %v611, 4
      %v672 = vpop.permute.xlu0 %671
      %673 = vrot.lane.b32.xlu0 %v614, 4
      %v674 = vpop.permute.xlu0 %673
      %675 = vrot.lane.b32.xlu0 %v616, 4
      %v676 = vpop.permute.xlu0 %675
      %vm707 = vcmask 1045504
      %v708 = vrot.slane %v479, 2
      %v709 = vrot.slane %v353, 2
      %v710 = vsel %vm707, %v708, %v709
      %v711 = vrot.slane %v495, 2
      %v712 = vsel %vm707, %v709, %v711
      %v713 = vrot.slane %v480, 2
      %v714 = vrot.slane %v356, 2
      %v715 = vsel %vm707, %v713, %v714
      %v716 = vrot.slane %v496, 2
      %v717 = vsel %vm707, %v714, %v716
      %v718 = vrot.slane %v481, 2
      %v719 = vrot.slane %v359, 2
      %v720 = vsel %vm707, %v718, %v719
      %v721 = vrot.slane %v497, 2
      %v722 = vsel %vm707, %v719, %v721
      %v723 = vrot.slane %v482, 2
      %v724 = vrot.slane %v362, 2
      %v725 = vsel %vm707, %v723, %v724
      %v726 = vrot.slane %v498, 2
      %v727 = vsel %vm707, %v724, %v726
      %v728 = vrot.slane %v483, 2
      %v729 = vrot.slane %v365, 2
      %v730 = vsel %vm707, %v728, %v729
      %v731 = vrot.slane %v499, 2
      %v732 = vsel %vm707, %v729, %v731
      %v733 = vrot.slane %v484, 2
      %v734 = vrot.slane %v368, 2
      %v735 = vsel %vm707, %v733, %v734
      %v736 = vrot.slane %v500, 2
      %v737 = vsel %vm707, %v734, %v736
      %v738 = vrot.slane %v485, 2
      %v739 = vrot.slane %v371, 2
      %v740 = vsel %vm707, %v738, %v739
      %v741 = vrot.slane %v501, 2
      %v742 = vsel %vm707, %v739, %v741
      %v743 = vrot.slane %v486, 2
      %v744 = vrot.slane %v374, 2
      %v745 = vsel %vm707, %v743, %v744
      %v746 = vrot.slane %v502, 2
      %v747 = vsel %vm707, %v744, %v746
      %v748 = vrot.slane %v487, 2
      %v749 = vrot.slane %v377, 2
      %v750 = vsel %vm707, %v748, %v749
      %v751 = vrot.slane %v503, 2
      %v752 = vsel %vm707, %v749, %v751
      %v753 = vrot.slane %v488, 2
      %v754 = vrot.slane %v380, 2
      %v755 = vsel %vm707, %v753, %v754
      %v756 = vrot.slane %v504, 2
      %v757 = vsel %vm707, %v754, %v756
      %v758 = vrot.slane %v489, 2
      %v759 = vrot.slane %v383, 2
      %v760 = vsel %vm707, %v758, %v759
      %v761 = vrot.slane %v505, 2
      %v762 = vsel %vm707, %v759, %v761
      %v763 = vrot.slane %v490, 2
      %v764 = vrot.slane %v386, 2
      %v765 = vsel %vm707, %v763, %v764
      %v766 = vrot.slane %v506, 2
      %v767 = vsel %vm707, %v764, %v766
      %v768 = vrot.slane %v491, 2
      %v769 = vrot.slane %v389, 2
      %v770 = vsel %vm707, %v768, %v769
      %v771 = vrot.slane %v507, 2
      %v772 = vsel %vm707, %v769, %v771
      %v773 = vrot.slane %v492, 2
      %v774 = vrot.slane %v392, 2
      %v775 = vsel %vm707, %v773, %v774
      %v776 = vrot.slane %v508, 2
      %v777 = vsel %vm707, %v774, %v776
      %v778 = vrot.slane %v493, 2
      %v779 = vrot.slane %v395, 2
      %v780 = vsel %vm707, %v778, %v779
      %v781 = vrot.slane %v509, 2
      %v782 = vsel %vm707, %v779, %v781
      %783 = vrot.lane.b32.xlu0 %v710, 8
      %v784 = vpop.permute.xlu0 %783
      %785 = vrot.lane.b32.xlu0 %v712, 8
      %v786 = vpop.permute.xlu0 %785
      %787 = vrot.lane.b32.xlu0 %v715, 8
      %v788 = vpop.permute.xlu0 %787
      %789 = vrot.lane.b32.xlu0 %v717, 8
      %v790 = vpop.permute.xlu0 %789
      %791 = vrot.lane.b32.xlu0 %v720, 8
      %v792 = vpop.permute.xlu0 %791
      %793 = vrot.lane.b32.xlu0 %v722, 8
      %v794 = vpop.permute.xlu0 %793
      %795 = vrot.lane.b32.xlu0 %v725, 8
      %v796 = vpop.permute.xlu0 %795
      %797 = vrot.lane.b32.xlu0 %v727, 8
      %v798 = vpop.permute.xlu0 %797
      %799 = vrot.lane.b32.xlu0 %v730, 8
      %v800 = vpop.permute.xlu0 %799
      %801 = vrot.lane.b32.xlu0 %v732, 8
      %v802 = vpop.permute.xlu0 %801
      %803 = vrot.lane.b32.xlu0 %v735, 8
      %v804 = vpop.permute.xlu0 %803
      %805 = vrot.lane.b32.xlu0 %v737, 8
      %v806 = vpop.permute.xlu0 %805
      %807 = vrot.lane.b32.xlu0 %v740, 8
      %v808 = vpop.permute.xlu0 %807
      %809 = vrot.lane.b32.xlu0 %v742, 8
      %v810 = vpop.permute.xlu0 %809
      %811 = vrot.lane.b32.xlu0 %v745, 8
      %v812 = vpop.permute.xlu0 %811
      %813 = vrot.lane.b32.xlu0 %v747, 8
      %v814 = vpop.permute.xlu0 %813
      %815 = vrot.lane.b32.xlu0 %v750, 8
      %v816 = vpop.permute.xlu0 %815
      %817 = vrot.lane.b32.xlu0 %v752, 8
      %v818 = vpop.permute.xlu0 %817
      %819 = vrot.lane.b32.xlu0 %v755, 8
      %v820 = vpop.permute.xlu0 %819
      %821 = vrot.lane.b32.xlu0 %v757, 8
      %v822 = vpop.permute.xlu0 %821
      %823 = vrot.lane.b32.xlu0 %v760, 8
      %v824 = vpop.permute.xlu0 %823
      %825 = vrot.lane.b32.xlu0 %v762, 8
      %v826 = vpop.permute.xlu0 %825
      %827 = vrot.lane.b32.xlu0 %v765, 8
      %v828 = vpop.permute.xlu0 %827
      %829 = vrot.lane.b32.xlu0 %v767, 8
      %v830 = vpop.permute.xlu0 %829
      %831 = vrot.lane.b32.xlu0 %v770, 8
      %v832 = vpop.permute.xlu0 %831
      %833 = vrot.lane.b32.xlu0 %v772, 8
      %v834 = vpop.permute.xlu0 %833
      %835 = vrot.lane.b32.xlu0 %v775, 8
      %v836 = vpop.permute.xlu0 %835
      %837 = vrot.lane.b32.xlu0 %v777, 8
      %v838 = vpop.permute.xlu0 %837
      %839 = vrot.lane.b32.xlu0 %v780, 8
      %v840 = vpop.permute.xlu0 %839
      %841 = vrot.lane.b32.xlu0 %v782, 8
      %v842 = vpop.permute.xlu0 %841
      %vm873 = vcmask 31744
      %v874 = vsel %vm873, %v479, %v618
      %v875 = vsel %vm873, %v353, %v620
      %v876 = vsel %vm873, %v480, %v622
      %v877 = vsel %vm873, %v356, %v624
      %v878 = vsel %vm873, %v481, %v626
      %v879 = vsel %vm873, %v359, %v628
      %v880 = vsel %vm873, %v482, %v630
      %v881 = vsel %vm873, %v362, %v632
      %v882 = vsel %vm873, %v483, %v634
      %v883 = vsel %vm873, %v365, %v636
      %v884 = vsel %vm873, %v484, %v638
      %v885 = vsel %vm873, %v368, %v640
      %v886 = vsel %vm873, %v485, %v642
      %v887 = vsel %vm873, %v371, %v644
      %v888 = vsel %vm873, %v486, %v646
      %v889 = vsel %vm873, %v374, %v648
      %v890 = vsel %vm873, %v487, %v650
      %v891 = vsel %vm873, %v377, %v652
      %v892 = vsel %vm873, %v488, %v654
      %v893 = vsel %vm873, %v380, %v656
      %v894 = vsel %vm873, %v489, %v658
      %v895 = vsel %vm873, %v383, %v660
      %v896 = vsel %vm873, %v490, %v662
      %v897 = vsel %vm873, %v386, %v664
      %v898 = vsel %vm873, %v491, %v666
      %v899 = vsel %vm873, %v389, %v668
      %v900 = vsel %vm873, %v492, %v670
      %v901 = vsel %vm873, %v392, %v672
      %v902 = vsel %vm873, %v493, %v674
      %v903 = vsel %vm873, %v395, %v676
      %vm904 = vcmask 64512
      %v905 = vsel %vm904, %v874, %v784
      %v906 = vsel %vm904, %v875, %v786
      %v907 = vsel %vm904, %v876, %v788
      %v908 = vsel %vm904, %v877, %v790
      %v909 = vsel %vm904, %v878, %v792
      %v910 = vsel %vm904, %v879, %v794
      %v911 = vsel %vm904, %v880, %v796
      %v912 = vsel %vm904, %v881, %v798
      %v913 = vsel %vm904, %v882, %v800
      %v914 = vsel %vm904, %v883, %v802
      %v915 = vsel %vm904, %v884, %v804
      %v916 = vsel %vm904, %v885, %v806
      %v917 = vsel %vm904, %v886, %v808
      %v918 = vsel %vm904, %v887, %v810
      %v919 = vsel %vm904, %v888, %v812
      %v920 = vsel %vm904, %v889, %v814
      %v921 = vsel %vm904, %v890, %v816
      %v922 = vsel %vm904, %v891, %v818
      %v923 = vsel %vm904, %v892, %v820
      %v924 = vsel %vm904, %v893, %v822
      %v925 = vsel %vm904, %v894, %v824
      %v926 = vsel %vm904, %v895, %v826
      %v927 = vsel %vm904, %v896, %v828
      %v928 = vsel %vm904, %v897, %v830
      %v929 = vsel %vm904, %v898, %v832
      %v930 = vsel %vm904, %v899, %v834
      %v931 = vsel %vm904, %v900, %v836
      %v932 = vsel %vm904, %v901, %v838
      %v933 = vsel %vm904, %v902, %v840
      %v934 = vsel %vm904, %v903, %v842
      %v937 = vrot.slane %v494, 1
      %v938 = vrot.slane %v398, 1
      %v939 = vsel %vm541, %v937, %v938
      %v940 = vrot.slane %v510, 1
      %v941 = vsel %vm541, %v938, %v940
      %942 = vrot.lane.b32.xlu0 %v939, 4
      %v943 = vpop.permute.xlu0 %942
      %944 = vrot.lane.b32.xlu0 %v941, 4
      %v945 = vpop.permute.xlu0 %944
      %v948 = vrot.slane %v494, 2
      %v949 = vrot.slane %v398, 2
      %v950 = vsel %vm707, %v948, %v949
      %v951 = vrot.slane %v510, 2
      %v952 = vsel %vm707, %v949, %v951
      %953 = vrot.lane.b32.xlu0 %v950, 8
      %v954 = vpop.permute.xlu0 %953
      %955 = vrot.lane.b32.xlu0 %v952, 8
      %v956 = vpop.permute.xlu0 %955
      %v959 = vsel %vm873, %v494, %v943
      %v960 = vsel %vm873, %v398, %v945
      %v961 = vsel %vm904, %v959, %v954
      %v962 = vsel %vm904, %v960, %v956
      %995 = vrot.lane.b32.xlu0 %v907, 12
      %v996 = vpop.permute.xlu0 %995
      %997 = vrot.lane.b32.xlu0 %v908, 12
      %v998 = vpop.permute.xlu0 %997
      %999 = vrot.lane.b32.xlu0 %v905, 12
      %v1000 = vpop.permute.xlu0 %999
      %1001 = vrot.lane.b32.xlu0 %v906, 12
      %v1002 = vpop.permute.xlu0 %1001
      %1003 = vrot.lane.b32.xlu0 %v909, 12
      %v1004 = vpop.permute.xlu0 %1003
      %1005 = vrot.lane.b32.xlu0 %v910, 12
      %v1006 = vpop.permute.xlu0 %1005
      %1007 = vrot.lane.b32.xlu0 %v911, 12
      %v1008 = vpop.permute.xlu0 %1007
      %1009 = vrot.lane.b32.xlu0 %v912, 12
      %v1010 = vpop.permute.xlu0 %1009
      %1011 = vrot.lane.b32.xlu0 %v913, 12
      %v1012 = vpop.permute.xlu0 %1011
      %1013 = vrot.lane.b32.xlu0 %v914, 12
      %v1014 = vpop.permute.xlu0 %1013
      %1015 = vrot.lane.b32.xlu0 %v915, 12
      %v1016 = vpop.permute.xlu0 %1015
      %1017 = vrot.lane.b32.xlu0 %v916, 12
      %v1018 = vpop.permute.xlu0 %1017
      %1019 = vrot.lane.b32.xlu0 %v917, 12
      %v1020 = vpop.permute.xlu0 %1019
      %1021 = vrot.lane.b32.xlu0 %v918, 12
      %v1022 = vpop.permute.xlu0 %1021
      %1023 = vrot.lane.b32.xlu0 %v919, 12
      %v1024 = vpop.permute.xlu0 %1023
      %1025 = vrot.lane.b32.xlu0 %v920, 12
      %v1026 = vpop.permute.xlu0 %1025
      %1027 = vrot.lane.b32.xlu0 %v921, 12
      %v1028 = vpop.permute.xlu0 %1027
      %1029 = vrot.lane.b32.xlu0 %v922, 12
      %v1030 = vpop.permute.xlu0 %1029
      %1031 = vrot.lane.b32.xlu0 %v923, 12
      %v1032 = vpop.permute.xlu0 %1031
      %1033 = vrot.lane.b32.xlu0 %v924, 12
      %v1034 = vpop.permute.xlu0 %1033
      %1035 = vrot.lane.b32.xlu0 %v925, 12
      %v1036 = vpop.permute.xlu0 %1035
      %1037 = vrot.lane.b32.xlu0 %v926, 12
      %v1038 = vpop.permute.xlu0 %1037
      %1039 = vrot.lane.b32.xlu0 %v927, 12
      %v1040 = vpop.permute.xlu0 %1039
      %1041 = vrot.lane.b32.xlu0 %v928, 12
      %v1042 = vpop.permute.xlu0 %1041
      %1043 = vrot.lane.b32.xlu0 %v929, 12
      %v1044 = vpop.permute.xlu0 %1043
      %1045 = vrot.lane.b32.xlu0 %v930, 12
      %v1046 = vpop.permute.xlu0 %1045
      %1047 = vrot.lane.b32.xlu0 %v931, 12
      %v1048 = vpop.permute.xlu0 %1047
      %1049 = vrot.lane.b32.xlu0 %v932, 12
      %v1050 = vpop.permute.xlu0 %1049
      %1051 = vrot.lane.b32.xlu0 %v933, 12
      %v1052 = vpop.permute.xlu0 %1051
      %1053 = vrot.lane.b32.xlu0 %v934, 12
      %v1054 = vpop.permute.xlu0 %1053
      %1055 = vrot.lane.b32.xlu0 %v961, 12
      %v1056 = vpop.permute.xlu0 %1055
      %1057 = vrot.lane.b32.xlu0 %v962, 12
      %v1058 = vpop.permute.xlu0 %1057
      %1091 = vrot.lane.b32.xlu0 %v905, 24
      %v1092 = vpop.permute.xlu0 %1091
      %1093 = vrot.lane.b32.xlu0 %v906, 24
      %v1094 = vpop.permute.xlu0 %1093
      %1095 = vrot.lane.b32.xlu0 %v909, 24
      %v1096 = vpop.permute.xlu0 %1095
      %1097 = vrot.lane.b32.xlu0 %v910, 24
      %v1098 = vpop.permute.xlu0 %1097
      %1099 = vrot.lane.b32.xlu0 %v911, 24
      %v1100 = vpop.permute.xlu0 %1099
      %1101 = vrot.lane.b32.xlu0 %v912, 24
      %v1102 = vpop.permute.xlu0 %1101
      %1103 = vrot.lane.b32.xlu0 %v913, 24
      %v1104 = vpop.permute.xlu0 %1103
      %1105 = vrot.lane.b32.xlu0 %v914, 24
      %v1106 = vpop.permute.xlu0 %1105
      %1107 = vrot.lane.b32.xlu0 %v915, 24
      %v1108 = vpop.permute.xlu0 %1107
      %1109 = vrot.lane.b32.xlu0 %v916, 24
      %v1110 = vpop.permute.xlu0 %1109
      %1111 = vrot.lane.b32.xlu0 %v917, 24
      %v1112 = vpop.permute.xlu0 %1111
      %1113 = vrot.lane.b32.xlu0 %v918, 24
      %v1114 = vpop.permute.xlu0 %1113
      %1115 = vrot.lane.b32.xlu0 %v919, 24
      %v1116 = vpop.permute.xlu0 %1115
      %1117 = vrot.lane.b32.xlu0 %v920, 24
      %v1118 = vpop.permute.xlu0 %1117
      %1119 = vrot.lane.b32.xlu0 %v921, 24
      %v1120 = vpop.permute.xlu0 %1119
      %1121 = vrot.lane.b32.xlu0 %v922, 24
      %v1122 = vpop.permute.xlu0 %1121
      %1123 = vrot.lane.b32.xlu0 %v923, 24
      %v1124 = vpop.permute.xlu0 %1123
      %1125 = vrot.lane.b32.xlu0 %v924, 24
      %v1126 = vpop.permute.xlu0 %1125
      %1127 = vrot.lane.b32.xlu0 %v925, 24
      %v1128 = vpop.permute.xlu0 %1127
      %1129 = vrot.lane.b32.xlu0 %v926, 24
      %v1130 = vpop.permute.xlu0 %1129
      %1131 = vrot.lane.b32.xlu0 %v927, 24
      %v1132 = vpop.permute.xlu0 %1131
      %1133 = vrot.lane.b32.xlu0 %v928, 24
      %v1134 = vpop.permute.xlu0 %1133
      %1135 = vrot.lane.b32.xlu0 %v929, 24
      %v1136 = vpop.permute.xlu0 %1135
      %1137 = vrot.lane.b32.xlu0 %v930, 24
      %v1138 = vpop.permute.xlu0 %1137
      %1139 = vrot.lane.b32.xlu0 %v931, 24
      %v1140 = vpop.permute.xlu0 %1139
      %1141 = vrot.lane.b32.xlu0 %v932, 24
      %v1142 = vpop.permute.xlu0 %1141
      %1143 = vrot.lane.b32.xlu0 %v933, 24
      %v1144 = vpop.permute.xlu0 %1143
      %1145 = vrot.lane.b32.xlu0 %v934, 24
      %v1146 = vpop.permute.xlu0 %1145
      %1147 = vrot.lane.b32.xlu0 %v961, 24
      %v1148 = vpop.permute.xlu0 %1147
      %1149 = vrot.lane.b32.xlu0 %v962, 24
      %v1150 = vpop.permute.xlu0 %1149
      %vm1181 = vcmask 97280
      %v1182 = vsel %vm1181, %v905, %v996
      %v1183 = vsel %vm1181, %v906, %v998
      %v1184 = vsel %vm1181, %v907, %v1000
      %v1185 = vsel %vm1181, %v908, %v1002
      %v1186 = vsel %vm1181, %v905, %v1004
      %v1187 = vsel %vm1181, %v906, %v1006
      %v1188 = vsel %vm1181, %v909, %v1008
      %v1189 = vsel %vm1181, %v910, %v1010
      %v1190 = vsel %vm1181, %v911, %v1012
      %v1191 = vsel %vm1181, %v912, %v1014
      %v1192 = vsel %vm1181, %v913, %v1016
      %v1193 = vsel %vm1181, %v914, %v1018
      %v1194 = vsel %vm1181, %v915, %v1020
      %v1195 = vsel %vm1181, %v916, %v1022
      %v1196 = vsel %vm1181, %v917, %v1024
      %v1197 = vsel %vm1181, %v918, %v1026
      %v1198 = vsel %vm1181, %v919, %v1028
      %v1199 = vsel %vm1181, %v920, %v1030
      %v1200 = vsel %vm1181, %v921, %v1032
      %v1201 = vsel %vm1181, %v922, %v1034
      %v1202 = vsel %vm1181, %v923, %v1036
      %v1203 = vsel %vm1181, %v924, %v1038
      %v1204 = vsel %vm1181, %v925, %v1040
      %v1205 = vsel %vm1181, %v926, %v1042
      %v1206 = vsel %vm1181, %v927, %v1044
      %v1207 = vsel %vm1181, %v928, %v1046
      %v1208 = vsel %vm1181, %v929, %v1048
      %v1209 = vsel %vm1181, %v930, %v1050
      %v1210 = vsel %vm1181, %v931, %v1052
      %v1211 = vsel %vm1181, %v932, %v1054
      %v1212 = vsel %vm1181, %v933, %v1056
      %v1213 = vsel %vm1181, %v934, %v1058
      %vm1214 = vcmask 195584
      %v1215 = vsel %vm1214, %v1182, %v1092
      %v1216 = vsel %vm1214, %v1183, %v1094
      %v1217 = vsel %vm1214, %v1184, %v1096
      %v1218 = vsel %vm1214, %v1185, %v1098
      %v1219 = vsel %vm1214, %v1186, %v1100
      %v1220 = vsel %vm1214, %v1187, %v1102
      %v1221 = vsel %vm1214, %v1188, %v1104
      %v1222 = vsel %vm1214, %v1189, %v1106
      %v1223 = vsel %vm1214, %v1190, %v1108
      %v1224 = vsel %vm1214, %v1191, %v1110
      %v1225 = vsel %vm1214, %v1192, %v1112
      %v1226 = vsel %vm1214, %v1193, %v1114
      %v1227 = vsel %vm1214, %v1194, %v1116
      %v1228 = vsel %vm1214, %v1195, %v1118
      %v1229 = vsel %vm1214, %v1196, %v1120
      %v1230 = vsel %vm1214, %v1197, %v1122
      %v1231 = vsel %vm1214, %v1198, %v1124
      %v1232 = vsel %vm1214, %v1199, %v1126
      %v1233 = vsel %vm1214, %v1200, %v1128
      %v1234 = vsel %vm1214, %v1201, %v1130
      %v1235 = vsel %vm1214, %v1202, %v1132
      %v1236 = vsel %vm1214, %v1203, %v1134
      %v1237 = vsel %vm1214, %v1204, %v1136
      %v1238 = vsel %vm1214, %v1205, %v1138
      %v1239 = vsel %vm1214, %v1206, %v1140
      %v1240 = vsel %vm1214, %v1207, %v1142
      %v1241 = vsel %vm1214, %v1208, %v1144
      %v1242 = vsel %vm1214, %v1209, %v1146
      %v1243 = vsel %vm1214, %v1210, %v1148
      %v1244 = vsel %vm1214, %v1211, %v1150
      %v1245 = vsel %vm1214, %v1212, %v1144
      %v1246 = vsel %vm1214, %v1213, %v1146
      %v1247 = vld [vmem:[%s2] sm:$0xff]
      %v1248 = vld [vmem:[%s2 + $0x8] sm:$0xff]
      %v1249 = vld [vmem:[%s2 + $0x10] sm:$0xff]
      %v1250 = vld [vmem:[%s2 + $0x18] sm:$0xff]
      %v1251 = vld [vmem:[%s2 + $0x20] sm:$0xf]
      %v1252 = vld [vmem:[%s3] sm:$0x1]
      %v1254 = vperm.slane %v1252, 0
      %vm1256 = vcmask 293888
      %v1258 = vsel %vm1256, %v1215, 0
      %v1261 = vsel %vm1256, %v1216, 0
      %v1264 = vsel %vm1256, %v1217, 0
      %v1267 = vsel %vm1256, %v1218, 0
      %v1270 = vsel %vm1256, %v1219, 0
      %v1273 = vsel %vm1256, %v1220, 0
      %v1276 = vsel %vm1256, %v1221, 0
      %v1279 = vsel %vm1256, %v1222, 0
      %v1282 = vsel %vm1256, %v1223, 0
      %v1285 = vsel %vm1256, %v1224, 0
      %v1288 = vsel %vm1256, %v1225, 0
      %v1291 = vsel %vm1256, %v1226, 0
      %v1294 = vsel %vm1256, %v1227, 0
      %v1297 = vsel %vm1256, %v1228, 0
      %v1300 = vsel %vm1256, %v1229, 0
      %v1303 = vsel %vm1256, %v1230, 0
      %v1306 = vsel %vm1256, %v1231, 0
      %v1309 = vsel %vm1256, %v1232, 0
      %v1312 = vsel %vm1256, %v1233, 0
      %v1315 = vsel %vm1256, %v1234, 0
      %v1318 = vsel %vm1256, %v1235, 0
      %v1321 = vsel %vm1256, %v1236, 0
      %v1324 = vsel %vm1256, %v1237, 0
      %v1327 = vsel %vm1256, %v1238, 0
      %v1330 = vsel %vm1256, %v1239, 0
      %v1333 = vsel %vm1256, %v1240, 0
      %v1336 = vsel %vm1256, %v1241, 0
      %v1339 = vsel %vm1256, %v1242, 0
      %v1342 = vsel %vm1256, %v1243, 0
      %v1345 = vsel %vm1256, %v1244, 0
      %v1348 = vsel %vm1256, %v1245, 0
      %v1351 = vsel %vm1256, %v1246, 0
      %vm1353 = vcmask 1043456
      %v1355 = vsel %vm1353, %v1251, 0
      %1357 = vmatpush.msra.mxu0 0.0
      %1358 = vmatpush.msra.mxu0 0.0
      %1359 = vmatpush.msra.mxu0 0.0
      %1360 = vmatpush.msra.mxu0 0.0
      %1361 = vmatpush.msra.mxu0 0.0
      %1362 = vmatpush.msra.mxu0 0.0
      %1363 = vmatpush.msra.mxu0 0.0
      %1364 = vmatpush.msra.mxu0 0.0
      %1365 = vmatpush.msra.mxu0 0.0
      %1366 = vmatpush.msra.mxu0 0.0
      %1367 = vmatpush.msra.mxu0 0.0
      %1368 = vmatpush.msra.mxu0 %v1355
      %1369 = vmatpush.msra.mxu0 %v1250
      %1370 = vmatpush.msra.mxu0 %v1249
      %1371 = vmatpush.msra.mxu0 %v1248
      %1372 = vmatpush.msra.mxu0 %v1247
      %1373 = vmatmul.f32.gmra.mxu0 %v1258
      %v1374 = vpop.f32.mrf.mxu0
      %v1375 = vadd.f32 %v1254, %v1374
      %1376 = vmatmul.f32.gmra.mxu0 %v1261
      %v1377 = vpop.f32.mrf.mxu0
      %v1378 = vadd.f32 %v1254, %v1377
      %1379 = vmatmul.f32.gmra.mxu0 %v1264
      %v1380 = vpop.f32.mrf.mxu0
      %v1381 = vadd.f32 %v1254, %v1380
      %1382 = vmatmul.f32.gmra.mxu0 %v1267
      %v1383 = vpop.f32.mrf.mxu0
      %v1384 = vadd.f32 %v1254, %v1383
      %1385 = vmatmul.f32.gmra.mxu0 %v1270
      %v1386 = vpop.f32.mrf.mxu0
      %v1387 = vadd.f32 %v1254, %v1386
      %1388 = vmatmul.f32.gmra.mxu0 %v1273
      %v1389 = vpop.f32.mrf.mxu0
      %v1390 = vadd.f32 %v1254, %v1389
      %1391 = vmatmul.f32.gmra.mxu0 %v1276
      %v1392 = vpop.f32.mrf.mxu0
      %v1393 = vadd.f32 %v1254, %v1392
      %1394 = vmatmul.f32.gmra.mxu0 %v1279
      %v1395 = vpop.f32.mrf.mxu0
      %v1396 = vadd.f32 %v1254, %v1395
      %1397 = vmatmul.f32.gmra.mxu0 %v1282
      %v1398 = vpop.f32.mrf.mxu0
      %v1399 = vadd.f32 %v1254, %v1398
      %1400 = vmatmul.f32.gmra.mxu0 %v1285
      %v1401 = vpop.f32.mrf.mxu0
      %v1402 = vadd.f32 %v1254, %v1401
      %1403 = vmatmul.f32.gmra.mxu0 %v1288
      %v1404 = vpop.f32.mrf.mxu0
      %v1405 = vadd.f32 %v1254, %v1404
      %1406 = vmatmul.f32.gmra.mxu0 %v1291
      %v1407 = vpop.f32.mrf.mxu0
      %v1408 = vadd.f32 %v1254, %v1407
      %1409 = vmatmul.f32.gmra.mxu0 %v1294
      %v1410 = vpop.f32.mrf.mxu0
      %v1411 = vadd.f32 %v1254, %v1410
      %1412 = vmatmul.f32.gmra.mxu0 %v1297
      %v1413 = vpop.f32.mrf.mxu0
      %v1414 = vadd.f32 %v1254, %v1413
      %1415 = vmatmul.f32.gmra.mxu0 %v1300
      %v1416 = vpop.f32.mrf.mxu0
      %v1417 = vadd.f32 %v1254, %v1416
      %1418 = vmatmul.f32.gmra.mxu0 %v1303
      %v1419 = vpop.f32.mrf.mxu0
      %v1420 = vadd.f32 %v1254, %v1419
      %1421 = vmatmul.f32.gmra.mxu0 %v1306
      %v1422 = vpop.f32.mrf.mxu0
      %v1423 = vadd.f32 %v1254, %v1422
      %1424 = vmatmul.f32.gmra.mxu0 %v1309
      %v1425 = vpop.f32.mrf.mxu0
      %v1426 = vadd.f32 %v1254, %v1425
      %1427 = vmatmul.f32.gmra.mxu0 %v1312
      %v1428 = vpop.f32.mrf.mxu0
      %v1429 = vadd.f32 %v1254, %v1428
      %1430 = vmatmul.f32.gmra.mxu0 %v1315
      %v1431 = vpop.f32.mrf.mxu0
      %v1432 = vadd.f32 %v1254, %v1431
      %1433 = vmatmul.f32.gmra.mxu0 %v1318
      %v1434 = vpop.f32.mrf.mxu0
      %v1435 = vadd.f32 %v1254, %v1434
      %1436 = vmatmul.f32.gmra.mxu0 %v1321
      %v1437 = vpop.f32.mrf.mxu0
      %v1438 = vadd.f32 %v1254, %v1437
      %1439 = vmatmul.f32.gmra.mxu0 %v1324
      %v1440 = vpop.f32.mrf.mxu0
      %v1441 = vadd.f32 %v1254, %v1440
      %1442 = vmatmul.f32.gmra.mxu0 %v1327
      %v1443 = vpop.f32.mrf.mxu0
      %v1444 = vadd.f32 %v1254, %v1443
      %1445 = vmatmul.f32.gmra.mxu0 %v1330
      %v1446 = vpop.f32.mrf.mxu0
      %v1447 = vadd.f32 %v1254, %v1446
      %1448 = vmatmul.f32.gmra.mxu0 %v1333
      %v1449 = vpop.f32.mrf.mxu0
      %v1450 = vadd.f32 %v1254, %v1449
      %1451 = vmatmul.f32.gmra.mxu0 %v1336
      %v1452 = vpop.f32.mrf.mxu0
      %v1453 = vadd.f32 %v1254, %v1452
      %1454 = vmatmul.f32.gmra.mxu0 %v1339
      %v1455 = vpop.f32.mrf.mxu0
      %v1456 = vadd.f32 %v1254, %v1455
      %1457 = vmatmul.f32.gmra.mxu0 %v1342
      %v1458 = vpop.f32.mrf.mxu0
      %v1459 = vadd.f32 %v1254, %v1458
      %1460 = vmatmul.f32.gmra.mxu0 %v1345
      %v1461 = vpop.f32.mrf.mxu0
      %v1462 = vadd.f32 %v1254, %v1461
      %1463 = vmatmul.f32.gmra.mxu0 %v1348
      %v1464 = vpop.f32.mrf.mxu0
      %v1465 = vadd.f32 %v1254, %v1464
      %1466 = vmatmul.f32.gmra.mxu0 %v1351
      %v1467 = vpop.f32.mrf.mxu0
      %v1468 = vadd.f32 %v1254, %v1467
      %1469 = vdwg.mxu0
      %vm1470 = vcmp.gt.f32.partialorder %v1375, 0.0
      %vm1471 = vcmp.gt.f32.partialorder %v1378, 0.0
      %vm1472 = vcmp.gt.f32.partialorder %v1381, 0.0
      %vm1473 = vcmp.gt.f32.partialorder %v1384, 0.0
      %vm1474 = vcmp.gt.f32.partialorder %v1387, 0.0
      %vm1475 = vcmp.gt.f32.partialorder %v1390, 0.0
      %vm1476 = vcmp.gt.f32.partialorder %v1393, 0.0
      %vm1477 = vcmp.gt.f32.partialorder %v1396, 0.0
      %vm1478 = vcmp.gt.f32.partialorder %v1399, 0.0
      %vm1479 = vcmp.gt.f32.partialorder %v1402, 0.0
      %vm1480 = vcmp.gt.f32.partialorder %v1405, 0.0
      %vm1481 = vcmp.gt.f32.partialorder %v1408, 0.0
      %vm1482 = vcmp.gt.f32.partialorder %v1411, 0.0
      %vm1483 = vcmp.gt.f32.partialorder %v1414, 0.0
      %vm1484 = vcmp.gt.f32.partialorder %v1417, 0.0
      %vm1485 = vcmp.gt.f32.partialorder %v1420, 0.0
      %vm1486 = vcmp.gt.f32.partialorder %v1423, 0.0
      %vm1487 = vcmp.gt.f32.partialorder %v1426, 0.0
      %vm1488 = vcmp.gt.f32.partialorder %v1429, 0.0
      %vm1489 = vcmp.gt.f32.partialorder %v1432, 0.0
      %vm1490 = vcmp.gt.f32.partialorder %v1435, 0.0
      %vm1491 = vcmp.gt.f32.partialorder %v1438, 0.0
      %vm1492 = vcmp.gt.f32.partialorder %v1441, 0.0
      %vm1493 = vcmp.gt.f32.partialorder %v1444, 0.0
      %vm1494 = vcmp.gt.f32.partialorder %v1447, 0.0
      %vm1495 = vcmp.gt.f32.partialorder %v1450, 0.0
      %vm1496 = vcmp.gt.f32.partialorder %v1453, 0.0
      %vm1497 = vcmp.gt.f32.partialorder %v1456, 0.0
      %vm1498 = vcmp.gt.f32.partialorder %v1459, 0.0
      %vm1499 = vcmp.gt.f32.partialorder %v1462, 0.0
      %vm1500 = vcmp.gt.f32.partialorder %v1465, 0.0
      %vm1501 = vcmp.gt.f32.partialorder %v1468, 0.0
      %v1502 = vstv %s285
      %v1503 = vmul.f32 %v1502, %v1375
      %v1504 = vmul.f32 %v1502, %v1378
      %v1505 = vmul.f32 %v1502, %v1381
      %v1506 = vmul.f32 %v1502, %v1384
      %v1507 = vmul.f32 %v1502, %v1387
      %v1508 = vmul.f32 %v1502, %v1390
      %v1509 = vmul.f32 %v1502, %v1393
      %v1510 = vmul.f32 %v1502, %v1396
      %v1511 = vmul.f32 %v1502, %v1399
      %v1512 = vmul.f32 %v1502, %v1402
      %v1513 = vmul.f32 %v1502, %v1405
      %v1514 = vmul.f32 %v1502, %v1408
      %v1515 = vmul.f32 %v1502, %v1411
      %v1516 = vmul.f32 %v1502, %v1414
      %v1517 = vmul.f32 %v1502, %v1417
      %v1518 = vmul.f32 %v1502, %v1420
      %v1519 = vmul.f32 %v1502, %v1423
      %v1520 = vmul.f32 %v1502, %v1426
      %v1521 = vmul.f32 %v1502, %v1429
      %v1522 = vmul.f32 %v1502, %v1432
      %v1523 = vmul.f32 %v1502, %v1435
      %v1524 = vmul.f32 %v1502, %v1438
      %v1525 = vmul.f32 %v1502, %v1441
      %v1526 = vmul.f32 %v1502, %v1444
      %v1527 = vmul.f32 %v1502, %v1447
      %v1528 = vmul.f32 %v1502, %v1450
      %v1529 = vmul.f32 %v1502, %v1453
      %v1530 = vmul.f32 %v1502, %v1456
      %v1531 = vmul.f32 %v1502, %v1459
      %v1532 = vmul.f32 %v1502, %v1462
      %v1533 = vmul.f32 %v1502, %v1465
      %v1534 = vmul.f32 %v1502, %v1468
      %v1535 = vsel %vm1470, %v1375, %v1503
      %v1536 = vsel %vm1471, %v1378, %v1504
      %v1537 = vsel %vm1472, %v1381, %v1505
      %v1538 = vsel %vm1473, %v1384, %v1506
      %v1539 = vsel %vm1474, %v1387, %v1507
      %v1540 = vsel %vm1475, %v1390, %v1508
      %v1541 = vsel %vm1476, %v1393, %v1509
      %v1542 = vsel %vm1477, %v1396, %v1510
      %v1543 = vsel %vm1478, %v1399, %v1511
      %v1544 = vsel %vm1479, %v1402, %v1512
      %v1545 = vsel %vm1480, %v1405, %v1513
      %v1546 = vsel %vm1481, %v1408, %v1514
      %v1547 = vsel %vm1482, %v1411, %v1515
      %v1548 = vsel %vm1483, %v1414, %v1516
      %v1549 = vsel %vm1484, %v1417, %v1517
      %v1550 = vsel %vm1485, %v1420, %v1518
      %v1551 = vsel %vm1486, %v1423, %v1519
      %v1552 = vsel %vm1487, %v1426, %v1520
      %v1553 = vsel %vm1488, %v1429, %v1521
      %v1554 = vsel %vm1489, %v1432, %v1522
      %v1555 = vsel %vm1490, %v1435, %v1523
      %v1556 = vsel %vm1491, %v1438, %v1524
      %v1557 = vsel %vm1492, %v1441, %v1525
      %v1558 = vsel %vm1493, %v1444, %v1526
      %v1559 = vsel %vm1494, %v1447, %v1527
      %v1560 = vsel %vm1495, %v1450, %v1528
      %v1561 = vsel %vm1496, %v1453, %v1529
      %v1562 = vsel %vm1497, %v1456, %v1530
      %v1563 = vsel %vm1498, %v1459, %v1531
      %v1564 = vsel %vm1499, %v1462, %v1532
      %v1565 = vsel %vm1500, %v1465, %v1533
      %v1566 = vsel %vm1501, %v1468, %v1534
      %v1583 = vrot.slane %v1537, 1
      %v1584 = vrot.slane %v1535, 1
      %v1585 = vrot.slane %v1539, 1
      %v1586 = vrot.slane %v1541, 1
      %v1587 = vrot.slane %v1543, 1
      %v1588 = vrot.slane %v1545, 1
      %v1589 = vrot.slane %v1547, 1
      %v1590 = vrot.slane %v1549, 1
      %v1591 = vrot.slane %v1551, 1
      %v1592 = vrot.slane %v1553, 1
      %v1593 = vrot.slane %v1555, 1
      %v1594 = vrot.slane %v1557, 1
      %v1595 = vrot.slane %v1559, 1
      %v1596 = vrot.slane %v1561, 1
      %v1597 = vrot.slane %v1563, 1
      %v1598 = vrot.slane %v1565, 1
      %v1631 = vrot.slane %v1537, 7
      %v1632 = vrot.slane %v1538, 7
      %v1633 = vsel %vm350, %v1631, %v1632
      %v1634 = vrot.slane %v1535, 7
      %v1635 = vrot.slane %v1536, 7
      %v1636 = vsel %vm350, %v1634, %v1635
      %v1637 = vrot.slane %v1539, 7
      %v1638 = vrot.slane %v1540, 7
      %v1639 = vsel %vm350, %v1637, %v1638
      %v1640 = vrot.slane %v1541, 7
      %v1641 = vrot.slane %v1542, 7
      %v1642 = vsel %vm350, %v1640, %v1641
      %v1643 = vrot.slane %v1543, 7
      %v1644 = vrot.slane %v1544, 7
      %v1645 = vsel %vm350, %v1643, %v1644
      %v1646 = vrot.slane %v1545, 7
      %v1647 = vrot.slane %v1546, 7
      %v1648 = vsel %vm350, %v1646, %v1647
      %v1649 = vrot.slane %v1547, 7
      %v1650 = vrot.slane %v1548, 7
      %v1651 = vsel %vm350, %v1649, %v1650
      %v1652 = vrot.slane %v1549, 7
      %v1653 = vrot.slane %v1550, 7
      %v1654 = vsel %vm350, %v1652, %v1653
      %v1655 = vrot.slane %v1551, 7
      %v1656 = vrot.slane %v1552, 7
      %v1657 = vsel %vm350, %v1655, %v1656
      %v1658 = vrot.slane %v1553, 7
      %v1659 = vrot.slane %v1554, 7
      %v1660 = vsel %vm350, %v1658, %v1659
      %v1661 = vrot.slane %v1555, 7
      %v1662 = vrot.slane %v1556, 7
      %v1663 = vsel %vm350, %v1661, %v1662
      %v1664 = vrot.slane %v1557, 7
      %v1665 = vrot.slane %v1558, 7
      %v1666 = vsel %vm350, %v1664, %v1665
      %v1667 = vrot.slane %v1559, 7
      %v1668 = vrot.slane %v1560, 7
      %v1669 = vsel %vm350, %v1667, %v1668
      %v1670 = vrot.slane %v1561, 7
      %v1671 = vrot.slane %v1562, 7
      %v1672 = vsel %vm350, %v1670, %v1671
      %v1673 = vrot.slane %v1563, 7
      %v1674 = vrot.slane %v1564, 7
      %v1675 = vsel %vm350, %v1673, %v1674
      %v1676 = vrot.slane %v1565, 7
      %v1677 = vrot.slane %v1566, 7
      %v1678 = vsel %vm350, %v1676, %v1677
      %v1727 = vrot.slane %v1538, 5
      %v1728 = vrot.slane %v1536, 5
      %v1729 = vrot.slane %v1540, 5
      %v1730 = vrot.slane %v1542, 5
      %v1731 = vrot.slane %v1544, 5
      %v1732 = vrot.slane %v1546, 5
      %v1733 = vrot.slane %v1548, 5
      %v1734 = vrot.slane %v1550, 5
      %v1735 = vrot.slane %v1552, 5
      %v1736 = vrot.slane %v1554, 5
      %v1737 = vrot.slane %v1556, 5
      %v1738 = vrot.slane %v1558, 5
      %v1739 = vrot.slane %v1560, 5
      %v1740 = vrot.slane %v1562, 5
      %v1741 = vrot.slane %v1564, 5
      %v1742 = vrot.slane %v1566, 5
      %v1759 = vsel %vm350, %v1583, %v1631
      %v1760 = vsel %vm350, %v1584, %v1634
      %v1761 = vsel %vm350, %v1585, %v1637
      %v1762 = vsel %vm350, %v1586, %v1640
      %v1763 = vsel %vm350, %v1587, %v1643
      %v1764 = vsel %vm350, %v1588, %v1646
      %v1765 = vsel %vm350, %v1589, %v1649
      %v1766 = vsel %vm350, %v1590, %v1652
      %v1767 = vsel %vm350, %v1591, %v1655
      %v1768 = vsel %vm350, %v1592, %v1658
      %v1769 = vsel %vm350, %v1593, %v1661
      %v1770 = vsel %vm350, %v1594, %v1664
      %v1771 = vsel %vm350, %v1595, %v1667
      %v1772 = vsel %vm350, %v1596, %v1670
      %v1773 = vsel %vm350, %v1597, %v1673
      %v1774 = vsel %vm350, %v1598, %v1676
      %v1775 = vsel %vm350, %v1632, %v1727
      %v1776 = vsel %vm350, %v1635, %v1728
      %v1777 = vsel %vm350, %v1638, %v1729
      %v1778 = vsel %vm350, %v1641, %v1730
      %v1779 = vsel %vm350, %v1644, %v1731
      %v1780 = vsel %vm350, %v1647, %v1732
      %v1781 = vsel %vm350, %v1650, %v1733
      %v1782 = vsel %vm350, %v1653, %v1734
      %v1783 = vsel %vm350, %v1656, %v1735
      %v1784 = vsel %vm350, %v1659, %v1736
      %v1785 = vsel %vm350, %v1662, %v1737
      %v1786 = vsel %vm350, %v1665, %v1738
      %v1787 = vsel %vm350, %v1668, %v1739
      %v1788 = vsel %vm350, %v1671, %v1740
      %v1789 = vsel %vm350, %v1674, %v1741
      %v1790 = vsel %vm350, %v1677, %v1742
      %v1821 = vrot.slane %v1759, 1
      %v1822 = vrot.slane %v1633, 1
      %v1823 = vsel %vm541, %v1821, %v1822
      %v1824 = vrot.slane %v1775, 1
      %v1825 = vsel %vm541, %v1822, %v1824
      %v1826 = vrot.slane %v1760, 1
      %v1827 = vrot.slane %v1636, 1
      %v1828 = vsel %vm541, %v1826, %v1827
      %v1829 = vrot.slane %v1776, 1
      %v1830 = vsel %vm541, %v1827, %v1829
      %v1831 = vrot.slane %v1761, 1
      %v1832 = vrot.slane %v1639, 1
      %v1833 = vsel %vm541, %v1831, %v1832
      %v1834 = vrot.slane %v1777, 1
      %v1835 = vsel %vm541, %v1832, %v1834
      %v1836 = vrot.slane %v1762, 1
      %v1837 = vrot.slane %v1642, 1
      %v1838 = vsel %vm541, %v1836, %v1837
      %v1839 = vrot.slane %v1778, 1
      %v1840 = vsel %vm541, %v1837, %v1839
      %v1841 = vrot.slane %v1763, 1
      %v1842 = vrot.slane %v1645, 1
      %v1843 = vsel %vm541, %v1841, %v1842
      %v1844 = vrot.slane %v1779, 1
      %v1845 = vsel %vm541, %v1842, %v1844
      %v1846 = vrot.slane %v1764, 1
      %v1847 = vrot.slane %v1648, 1
      %v1848 = vsel %vm541, %v1846, %v1847
      %v1849 = vrot.slane %v1780, 1
      %v1850 = vsel %vm541, %v1847, %v1849
      %v1851 = vrot.slane %v1765, 1
      %v1852 = vrot.slane %v1651, 1
      %v1853 = vsel %vm541, %v1851, %v1852
      %v1854 = vrot.slane %v1781, 1
      %v1855 = vsel %vm541, %v1852, %v1854
      %v1856 = vrot.slane %v1766, 1
      %v1857 = vrot.slane %v1654, 1
      %v1858 = vsel %vm541, %v1856, %v1857
      %v1859 = vrot.slane %v1782, 1
      %v1860 = vsel %vm541, %v1857, %v1859
      %v1861 = vrot.slane %v1767, 1
      %v1862 = vrot.slane %v1657, 1
      %v1863 = vsel %vm541, %v1861, %v1862
      %v1864 = vrot.slane %v1783, 1
      %v1865 = vsel %vm541, %v1862, %v1864
      %v1866 = vrot.slane %v1768, 1
      %v1867 = vrot.slane %v1660, 1
      %v1868 = vsel %vm541, %v1866, %v1867
      %v1869 = vrot.slane %v1784, 1
      %v1870 = vsel %vm541, %v1867, %v1869
      %v1871 = vrot.slane %v1769, 1
      %v1872 = vrot.slane %v1663, 1
      %v1873 = vsel %vm541, %v1871, %v1872
      %v1874 = vrot.slane %v1785, 1
      %v1875 = vsel %vm541, %v1872, %v1874
      %v1876 = vrot.slane %v1770, 1
      %v1877 = vrot.slane %v1666, 1
      %v1878 = vsel %vm541, %v1876, %v1877
      %v1879 = vrot.slane %v1786, 1
      %v1880 = vsel %vm541, %v1877, %v1879
      %v1881 = vrot.slane %v1771, 1
      %v1882 = vrot.slane %v1669, 1
      %v1883 = vsel %vm541, %v1881, %v1882
      %v1884 = vrot.slane %v1787, 1
      %v1885 = vsel %vm541, %v1882, %v1884
      %v1886 = vrot.slane %v1772, 1
      %v1887 = vrot.slane %v1672, 1
      %v1888 = vsel %vm541, %v1886, %v1887
      %v1889 = vrot.slane %v1788, 1
      %v1890 = vsel %vm541, %v1887, %v1889
      %v1891 = vrot.slane %v1773, 1
      %v1892 = vrot.slane %v1675, 1
      %v1893 = vsel %vm541, %v1891, %v1892
      %v1894 = vrot.slane %v1789, 1
      %v1895 = vsel %vm541, %v1892, %v1894
      %1896 = vrot.lane.b32.xlu0 %v1823, 4
      %v1897 = vpop.permute.xlu0 %1896
      %1898 = vrot.lane.b32.xlu0 %v1825, 4
      %v1899 = vpop.permute.xlu0 %1898
      %1900 = vrot.lane.b32.xlu0 %v1828, 4
      %v1901 = vpop.permute.xlu0 %1900
      %1902 = vrot.lane.b32.xlu0 %v1830, 4
      %v1903 = vpop.permute.xlu0 %1902
      %1904 = vrot.lane.b32.xlu0 %v1833, 4
      %v1905 = vpop.permute.xlu0 %1904
      %1906 = vrot.lane.b32.xlu0 %v1835, 4
      %v1907 = vpop.permute.xlu0 %1906
      %1908 = vrot.lane.b32.xlu0 %v1838, 4
      %v1909 = vpop.permute.xlu0 %1908
      %1910 = vrot.lane.b32.xlu0 %v1840, 4
      %v1911 = vpop.permute.xlu0 %1910
      %1912 = vrot.lane.b32.xlu0 %v1843, 4
      %v1913 = vpop.permute.xlu0 %1912
      %1914 = vrot.lane.b32.xlu0 %v1845, 4
      %v1915 = vpop.permute.xlu0 %1914
      %1916 = vrot.lane.b32.xlu0 %v1848, 4
      %v1917 = vpop.permute.xlu0 %1916
      %1918 = vrot.lane.b32.xlu0 %v1850, 4
      %v1919 = vpop.permute.xlu0 %1918
      %1920 = vrot.lane.b32.xlu0 %v1853, 4
      %v1921 = vpop.permute.xlu0 %1920
      %1922 = vrot.lane.b32.xlu0 %v1855, 4
      %v1923 = vpop.permute.xlu0 %1922
      %1924 = vrot.lane.b32.xlu0 %v1858, 4
      %v1925 = vpop.permute.xlu0 %1924
      %1926 = vrot.lane.b32.xlu0 %v1860, 4
      %v1927 = vpop.permute.xlu0 %1926
      %1928 = vrot.lane.b32.xlu0 %v1863, 4
      %v1929 = vpop.permute.xlu0 %1928
      %1930 = vrot.lane.b32.xlu0 %v1865, 4
      %v1931 = vpop.permute.xlu0 %1930
      %1932 = vrot.lane.b32.xlu0 %v1868, 4
      %v1933 = vpop.permute.xlu0 %1932
      %1934 = vrot.lane.b32.xlu0 %v1870, 4
      %v1935 = vpop.permute.xlu0 %1934
      %1936 = vrot.lane.b32.xlu0 %v1873, 4
      %v1937 = vpop.permute.xlu0 %1936
      %1938 = vrot.lane.b32.xlu0 %v1875, 4
      %v1939 = vpop.permute.xlu0 %1938
      %1940 = vrot.lane.b32.xlu0 %v1878, 4
      %v1941 = vpop.permute.xlu0 %1940
      %1942 = vrot.lane.b32.xlu0 %v1880, 4
      %v1943 = vpop.permute.xlu0 %1942
      %1944 = vrot.lane.b32.xlu0 %v1883, 4
      %v1945 = vpop.permute.xlu0 %1944
      %1946 = vrot.lane.b32.xlu0 %v1885, 4
      %v1947 = vpop.permute.xlu0 %1946
      %1948 = vrot.lane.b32.xlu0 %v1888, 4
      %v1949 = vpop.permute.xlu0 %1948
      %1950 = vrot.lane.b32.xlu0 %v1890, 4
      %v1951 = vpop.permute.xlu0 %1950
      %1952 = vrot.lane.b32.xlu0 %v1893, 4
      %v1953 = vpop.permute.xlu0 %1952
      %1954 = vrot.lane.b32.xlu0 %v1895, 4
      %v1955 = vpop.permute.xlu0 %1954
      %v1986 = vrot.slane %v1759, 2
      %v1987 = vrot.slane %v1633, 2
      %v1988 = vsel %vm707, %v1986, %v1987
      %v1989 = vrot.slane %v1775, 2
      %v1990 = vsel %vm707, %v1987, %v1989
      %v1991 = vrot.slane %v1760, 2
      %v1992 = vrot.slane %v1636, 2
      %v1993 = vsel %vm707, %v1991, %v1992
      %v1994 = vrot.slane %v1776, 2
      %v1995 = vsel %vm707, %v1992, %v1994
      %v1996 = vrot.slane %v1761, 2
      %v1997 = vrot.slane %v1639, 2
      %v1998 = vsel %vm707, %v1996, %v1997
      %v1999 = vrot.slane %v1777, 2
      %v2000 = vsel %vm707, %v1997, %v1999
      %v2001 = vrot.slane %v1762, 2
      %v2002 = vrot.slane %v1642, 2
      %v2003 = vsel %vm707, %v2001, %v2002
      %v2004 = vrot.slane %v1778, 2
      %v2005 = vsel %vm707, %v2002, %v2004
      %v2006 = vrot.slane %v1763, 2
      %v2007 = vrot.slane %v1645, 2
      %v2008 = vsel %vm707, %v2006, %v2007
      %v2009 = vrot.slane %v1779, 2
      %v2010 = vsel %vm707, %v2007, %v2009
      %v2011 = vrot.slane %v1764, 2
      %v2012 = vrot.slane %v1648, 2
      %v2013 = vsel %vm707, %v2011, %v2012
      %v2014 = vrot.slane %v1780, 2
      %v2015 = vsel %vm707, %v2012, %v2014
      %v2016 = vrot.slane %v1765, 2
      %v2017 = vrot.slane %v1651, 2
      %v2018 = vsel %vm707, %v2016, %v2017
      %v2019 = vrot.slane %v1781, 2
      %v2020 = vsel %vm707, %v2017, %v2019
      %v2021 = vrot.slane %v1766, 2
      %v2022 = vrot.slane %v1654, 2
      %v2023 = vsel %vm707, %v2021, %v2022
      %v2024 = vrot.slane %v1782, 2
      %v2025 = vsel %vm707, %v2022, %v2024
      %v2026 = vrot.slane %v1767, 2
      %v2027 = vrot.slane %v1657, 2
      %v2028 = vsel %vm707, %v2026, %v2027
      %v2029 = vrot.slane %v1783, 2
      %v2030 = vsel %vm707, %v2027, %v2029
      %v2031 = vrot.slane %v1768, 2
      %v2032 = vrot.slane %v1660, 2
      %v2033 = vsel %vm707, %v2031, %v2032
      %v2034 = vrot.slane %v1784, 2
      %v2035 = vsel %vm707, %v2032, %v2034
      %v2036 = vrot.slane %v1769, 2
      %v2037 = vrot.slane %v1663, 2
      %v2038 = vsel %vm707, %v2036, %v2037
      %v2039 = vrot.slane %v1785, 2
      %v2040 = vsel %vm707, %v2037, %v2039
      %v2041 = vrot.slane %v1770, 2
      %v2042 = vrot.slane %v1666, 2
      %v2043 = vsel %vm707, %v2041, %v2042
      %v2044 = vrot.slane %v1786, 2
      %v2045 = vsel %vm707, %v2042, %v2044
      %v2046 = vrot.slane %v1771, 2
      %v2047 = vrot.slane %v1669, 2
      %v2048 = vsel %vm707, %v2046, %v2047
      %v2049 = vrot.slane %v1787, 2
      %v2050 = vsel %vm707, %v2047, %v2049
      %v2051 = vrot.slane %v1772, 2
      %v2052 = vrot.slane %v1672, 2
      %v2053 = vsel %vm707, %v2051, %v2052
      %v2054 = vrot.slane %v1788, 2
      %v2055 = vsel %vm707, %v2052, %v2054
      %v2056 = vrot.slane %v1773, 2
      %v2057 = vrot.slane %v1675, 2
      %v2058 = vsel %vm707, %v2056, %v2057
      %v2059 = vrot.slane %v1789, 2
      %v2060 = vsel %vm707, %v2057, %v2059
      %2061 = vrot.lane.b32.xlu0 %v1988, 8
      %v2062 = vpop.permute.xlu0 %2061
      %2063 = vrot.lane.b32.xlu0 %v1990, 8
      %v2064 = vpop.permute.xlu0 %2063
      %2065 = vrot.lane.b32.xlu0 %v1993, 8
      %v2066 = vpop.permute.xlu0 %2065
      %2067 = vrot.lane.b32.xlu0 %v1995, 8
      %v2068 = vpop.permute.xlu0 %2067
      %2069 = vrot.lane.b32.xlu0 %v1998, 8
      %v2070 = vpop.permute.xlu0 %2069
      %2071 = vrot.lane.b32.xlu0 %v2000, 8
      %v2072 = vpop.permute.xlu0 %2071
      %2073 = vrot.lane.b32.xlu0 %v2003, 8
      %v2074 = vpop.permute.xlu0 %2073
      %2075 = vrot.lane.b32.xlu0 %v2005, 8
      %v2076 = vpop.permute.xlu0 %2075
      %2077 = vrot.lane.b32.xlu0 %v2008, 8
      %v2078 = vpop.permute.xlu0 %2077
      %2079 = vrot.lane.b32.xlu0 %v2010, 8
      %v2080 = vpop.permute.xlu0 %2079
      %2081 = vrot.lane.b32.xlu0 %v2013, 8
      %v2082 = vpop.permute.xlu0 %2081
      %2083 = vrot.lane.b32.xlu0 %v2015, 8
      %v2084 = vpop.permute.xlu0 %2083
      %2085 = vrot.lane.b32.xlu0 %v2018, 8
      %v2086 = vpop.permute.xlu0 %2085
      %2087 = vrot.lane.b32.xlu0 %v2020, 8
      %v2088 = vpop.permute.xlu0 %2087
      %2089 = vrot.lane.b32.xlu0 %v2023, 8
      %v2090 = vpop.permute.xlu0 %2089
      %2091 = vrot.lane.b32.xlu0 %v2025, 8
      %v2092 = vpop.permute.xlu0 %2091
      %2093 = vrot.lane.b32.xlu0 %v2028, 8
      %v2094 = vpop.permute.xlu0 %2093
      %2095 = vrot.lane.b32.xlu0 %v2030, 8
      %v2096 = vpop.permute.xlu0 %2095
      %2097 = vrot.lane.b32.xlu0 %v2033, 8
      %v2098 = vpop.permute.xlu0 %2097
      %2099 = vrot.lane.b32.xlu0 %v2035, 8
      %v2100 = vpop.permute.xlu0 %2099
      %2101 = vrot.lane.b32.xlu0 %v2038, 8
      %v2102 = vpop.permute.xlu0 %2101
      %2103 = vrot.lane.b32.xlu0 %v2040, 8
      %v2104 = vpop.permute.xlu0 %2103
      %2105 = vrot.lane.b32.xlu0 %v2043, 8
      %v2106 = vpop.permute.xlu0 %2105
      %2107 = vrot.lane.b32.xlu0 %v2045, 8
      %v2108 = vpop.permute.xlu0 %2107
      %2109 = vrot.lane.b32.xlu0 %v2048, 8
      %v2110 = vpop.permute.xlu0 %2109
      %2111 = vrot.lane.b32.xlu0 %v2050, 8
      %v2112 = vpop.permute.xlu0 %2111
      %2113 = vrot.lane.b32.xlu0 %v2053, 8
      %v2114 = vpop.permute.xlu0 %2113
      %2115 = vrot.lane.b32.xlu0 %v2055, 8
      %v2116 = vpop.permute.xlu0 %2115
      %2117 = vrot.lane.b32.xlu0 %v2058, 8
      %v2118 = vpop.permute.xlu0 %2117
      %2119 = vrot.lane.b32.xlu0 %v2060, 8
      %v2120 = vpop.permute.xlu0 %2119
      %v2151 = vsel %vm873, %v1759, %v1897
      %v2152 = vsel %vm873, %v1633, %v1899
      %v2153 = vsel %vm873, %v1760, %v1901
      %v2154 = vsel %vm873, %v1636, %v1903
      %v2155 = vsel %vm873, %v1761, %v1905
      %v2156 = vsel %vm873, %v1639, %v1907
      %v2157 = vsel %vm873, %v1762, %v1909
      %v2158 = vsel %vm873, %v1642, %v1911
      %v2159 = vsel %vm873, %v1763, %v1913
      %v2160 = vsel %vm873, %v1645, %v1915
      %v2161 = vsel %vm873, %v1764, %v1917
      %v2162 = vsel %vm873, %v1648, %v1919
      %v2163 = vsel %vm873, %v1765, %v1921
      %v2164 = vsel %vm873, %v1651, %v1923
      %v2165 = vsel %vm873, %v1766, %v1925
      %v2166 = vsel %vm873, %v1654, %v1927
      %v2167 = vsel %vm873, %v1767, %v1929
      %v2168 = vsel %vm873, %v1657, %v1931
      %v2169 = vsel %vm873, %v1768, %v1933
      %v2170 = vsel %vm873, %v1660, %v1935
      %v2171 = vsel %vm873, %v1769, %v1937
      %v2172 = vsel %vm873, %v1663, %v1939
      %v2173 = vsel %vm873, %v1770, %v1941
      %v2174 = vsel %vm873, %v1666, %v1943
      %v2175 = vsel %vm873, %v1771, %v1945
      %v2176 = vsel %vm873, %v1669, %v1947
      %v2177 = vsel %vm873, %v1772, %v1949
      %v2178 = vsel %vm873, %v1672, %v1951
      %v2179 = vsel %vm873, %v1773, %v1953
      %v2180 = vsel %vm873, %v1675, %v1955
      %v2181 = vsel %vm904, %v2151, %v2062
      %v2182 = vsel %vm904, %v2152, %v2064
      %v2183 = vsel %vm904, %v2153, %v2066
      %v2184 = vsel %vm904, %v2154, %v2068
      %v2185 = vsel %vm904, %v2155, %v2070
      %v2186 = vsel %vm904, %v2156, %v2072
      %v2187 = vsel %vm904, %v2157, %v2074
      %v2188 = vsel %vm904, %v2158, %v2076
      %v2189 = vsel %vm904, %v2159, %v2078
      %v2190 = vsel %vm904, %v2160, %v2080
      %v2191 = vsel %vm904, %v2161, %v2082
      %v2192 = vsel %vm904, %v2162, %v2084
      %v2193 = vsel %vm904, %v2163, %v2086
      %v2194 = vsel %vm904, %v2164, %v2088
      %v2195 = vsel %vm904, %v2165, %v2090
      %v2196 = vsel %vm904, %v2166, %v2092
      %v2197 = vsel %vm904, %v2167, %v2094
      %v2198 = vsel %vm904, %v2168, %v2096
      %v2199 = vsel %vm904, %v2169, %v2098
      %v2200 = vsel %vm904, %v2170, %v2100
      %v2201 = vsel %vm904, %v2171, %v2102
      %v2202 = vsel %vm904, %v2172, %v2104
      %v2203 = vsel %vm904, %v2173, %v2106
      %v2204 = vsel %vm904, %v2174, %v2108
      %v2205 = vsel %vm904, %v2175, %v2110
      %v2206 = vsel %vm904, %v2176, %v2112
      %v2207 = vsel %vm904, %v2177, %v2114
      %v2208 = vsel %vm904, %v2178, %v2116
      %v2209 = vsel %vm904, %v2179, %v2118
      %v2210 = vsel %vm904, %v2180, %v2120
      %v2213 = vrot.slane %v1774, 1
      %v2214 = vrot.slane %v1678, 1
      %v2215 = vsel %vm541, %v2213, %v2214
      %v2216 = vrot.slane %v1790, 1
      %v2217 = vsel %vm541, %v2214, %v2216
      %2218 = vrot.lane.b32.xlu0 %v2215, 4
      %v2219 = vpop.permute.xlu0 %2218
      %2220 = vrot.lane.b32.xlu0 %v2217, 4
      %v2221 = vpop.permute.xlu0 %2220
      %v2224 = vrot.slane %v1774, 2
      %v2225 = vrot.slane %v1678, 2
      %v2226 = vsel %vm707, %v2224, %v2225
      %v2227 = vrot.slane %v1790, 2
      %v2228 = vsel %vm707, %v2225, %v2227
      %2229 = vrot.lane.b32.xlu0 %v2226, 8
      %v2230 = vpop.permute.xlu0 %2229
      %2231 = vrot.lane.b32.xlu0 %v2228, 8
      %v2232 = vpop.permute.xlu0 %2231
      %v2235 = vsel %vm873, %v1774, %v2219
      %v2236 = vsel %vm873, %v1678, %v2221
      %v2237 = vsel %vm904, %v2235, %v2230
      %v2238 = vsel %vm904, %v2236, %v2232
      %2271 = vrot.lane.b32.xlu0 %v2183, 12
      %v2272 = vpop.permute.xlu0 %2271
      %2273 = vrot.lane.b32.xlu0 %v2184, 12
      %v2274 = vpop.permute.xlu0 %2273
      %2275 = vrot.lane.b32.xlu0 %v2181, 12
      %v2276 = vpop.permute.xlu0 %2275
      %2277 = vrot.lane.b32.xlu0 %v2182, 12
      %v2278 = vpop.permute.xlu0 %2277
      %2279 = vrot.lane.b32.xlu0 %v2185, 12
      %v2280 = vpop.permute.xlu0 %2279
      %2281 = vrot.lane.b32.xlu0 %v2186, 12
      %v2282 = vpop.permute.xlu0 %2281
      %2283 = vrot.lane.b32.xlu0 %v2187, 12
      %v2284 = vpop.permute.xlu0 %2283
      %2285 = vrot.lane.b32.xlu0 %v2188, 12
      %v2286 = vpop.permute.xlu0 %2285
      %2287 = vrot.lane.b32.xlu0 %v2189, 12
      %v2288 = vpop.permute.xlu0 %2287
      %2289 = vrot.lane.b32.xlu0 %v2190, 12
      %v2290 = vpop.permute.xlu0 %2289
      %2291 = vrot.lane.b32.xlu0 %v2191, 12
      %v2292 = vpop.permute.xlu0 %2291
      %2293 = vrot.lane.b32.xlu0 %v2192, 12
      %v2294 = vpop.permute.xlu0 %2293
      %2295 = vrot.lane.b32.xlu0 %v2193, 12
      %v2296 = vpop.permute.xlu0 %2295
      %2297 = vrot.lane.b32.xlu0 %v2194, 12
      %v2298 = vpop.permute.xlu0 %2297
      %2299 = vrot.lane.b32.xlu0 %v2195, 12
      %v2300 = vpop.permute.xlu0 %2299
      %2301 = vrot.lane.b32.xlu0 %v2196, 12
      %v2302 = vpop.permute.xlu0 %2301
      %2303 = vrot.lane.b32.xlu0 %v2197, 12
      %v2304 = vpop.permute.xlu0 %2303
      %2305 = vrot.lane.b32.xlu0 %v2198, 12
      %v2306 = vpop.permute.xlu0 %2305
      %2307 = vrot.lane.b32.xlu0 %v2199, 12
      %v2308 = vpop.permute.xlu0 %2307
      %2309 = vrot.lane.b32.xlu0 %v2200, 12
      %v2310 = vpop.permute.xlu0 %2309
      %2311 = vrot.lane.b32.xlu0 %v2201, 12
      %v2312 = vpop.permute.xlu0 %2311
      %2313 = vrot.lane.b32.xlu0 %v2202, 12
      %v2314 = vpop.permute.xlu0 %2313
      %2315 = vrot.lane.b32.xlu0 %v2203, 12
      %v2316 = vpop.permute.xlu0 %2315
      %2317 = vrot.lane.b32.xlu0 %v2204, 12
      %v2318 = vpop.permute.xlu0 %2317
      %2319 = vrot.lane.b32.xlu0 %v2205, 12
      %v2320 = vpop.permute.xlu0 %2319
      %2321 = vrot.lane.b32.xlu0 %v2206, 12
      %v2322 = vpop.permute.xlu0 %2321
      %2323 = vrot.lane.b32.xlu0 %v2207, 12
      %v2324 = vpop.permute.xlu0 %2323
      %2325 = vrot.lane.b32.xlu0 %v2208, 12
      %v2326 = vpop.permute.xlu0 %2325
      %2327 = vrot.lane.b32.xlu0 %v2209, 12
      %v2328 = vpop.permute.xlu0 %2327
      %2329 = vrot.lane.b32.xlu0 %v2210, 12
      %v2330 = vpop.permute.xlu0 %2329
      %2331 = vrot.lane.b32.xlu0 %v2237, 12
      %v2332 = vpop.permute.xlu0 %2331
      %2333 = vrot.lane.b32.xlu0 %v2238, 12
      %v2334 = vpop.permute.xlu0 %2333
      %2367 = vrot.lane.b32.xlu0 %v2181, 24
      %v2368 = vpop.permute.xlu0 %2367
      %2369 = vrot.lane.b32.xlu0 %v2182, 24
      %v2370 = vpop.permute.xlu0 %2369
      %2371 = vrot.lane.b32.xlu0 %v2185, 24
      %v2372 = vpop.permute.xlu0 %2371
      %2373 = vrot.lane.b32.xlu0 %v2186, 24
      %v2374 = vpop.permute.xlu0 %2373
      %2375 = vrot.lane.b32.xlu0 %v2187, 24
      %v2376 = vpop.permute.xlu0 %2375
      %2377 = vrot.lane.b32.xlu0 %v2188, 24
      %v2378 = vpop.permute.xlu0 %2377
      %2379 = vrot.lane.b32.xlu0 %v2189, 24
      %v2380 = vpop.permute.xlu0 %2379
      %2381 = vrot.lane.b32.xlu0 %v2190, 24
      %v2382 = vpop.permute.xlu0 %2381
      %2383 = vrot.lane.b32.xlu0 %v2191, 24
      %v2384 = vpop.permute.xlu0 %2383
      %2385 = vrot.lane.b32.xlu0 %v2192, 24
      %v2386 = vpop.permute.xlu0 %2385
      %2387 = vrot.lane.b32.xlu0 %v2193, 24
      %v2388 = vpop.permute.xlu0 %2387
      %2389 = vrot.lane.b32.xlu0 %v2194, 24
      %v2390 = vpop.permute.xlu0 %2389
      %2391 = vrot.lane.b32.xlu0 %v2195, 24
      %v2392 = vpop.permute.xlu0 %2391
      %2393 = vrot.lane.b32.xlu0 %v2196, 24
      %v2394 = vpop.permute.xlu0 %2393
      %2395 = vrot.lane.b32.xlu0 %v2197, 24
      %v2396 = vpop.permute.xlu0 %2395
      %2397 = vrot.lane.b32.xlu0 %v2198, 24
      %v2398 = vpop.permute.xlu0 %2397
      %2399 = vrot.lane.b32.xlu0 %v2199, 24
      %v2400 = vpop.permute.xlu0 %2399
      %2401 = vrot.lane.b32.xlu0 %v2200, 24
      %v2402 = vpop.permute.xlu0 %2401
      %2403 = vrot.lane.b32.xlu0 %v2201, 24
      %v2404 = vpop.permute.xlu0 %2403
      %2405 = vrot.lane.b32.xlu0 %v2202, 24
      %v2406 = vpop.permute.xlu0 %2405
      %2407 = vrot.lane.b32.xlu0 %v2203, 24
      %v2408 = vpop.permute.xlu0 %2407
      %2409 = vrot.lane.b32.xlu0 %v2204, 24
      %v2410 = vpop.permute.xlu0 %2409
      %2411 = vrot.lane.b32.xlu0 %v2205, 24
      %v2412 = vpop.permute.xlu0 %2411
      %2413 = vrot.lane.b32.xlu0 %v2206, 24
      %v2414 = vpop.permute.xlu0 %2413
      %2415 = vrot.lane.b32.xlu0 %v2207, 24
      %v2416 = vpop.permute.xlu0 %2415
      %2417 = vrot.lane.b32.xlu0 %v2208, 24
      %v2418 = vpop.permute.xlu0 %2417
      %2419 = vrot.lane.b32.xlu0 %v2209, 24
      %v2420 = vpop.permute.xlu0 %2419
      %2421 = vrot.lane.b32.xlu0 %v2210, 24
      %v2422 = vpop.permute.xlu0 %2421
      %2423 = vrot.lane.b32.xlu0 %v2237, 24
      %v2424 = vpop.permute.xlu0 %2423
      %2425 = vrot.lane.b32.xlu0 %v2238, 24
      %v2426 = vpop.permute.xlu0 %2425
      %v2457 = vsel %vm1181, %v2181, %v2272
      %v2458 = vsel %vm1181, %v2182, %v2274
      %v2459 = vsel %vm1181, %v2183, %v2276
      %v2460 = vsel %vm1181, %v2184, %v2278
      %v2461 = vsel %vm1181, %v2181, %v2280
      %v2462 = vsel %vm1181, %v2182, %v2282
      %v2463 = vsel %vm1181, %v2185, %v2284
      %v2464 = vsel %vm1181, %v2186, %v2286
      %v2465 = vsel %vm1181, %v2187, %v2288
      %v2466 = vsel %vm1181, %v2188, %v2290
      %v2467 = vsel %vm1181, %v2189, %v2292
      %v2468 = vsel %vm1181, %v2190, %v2294
      %v2469 = vsel %vm1181, %v2191, %v2296
      %v2470 = vsel %vm1181, %v2192, %v2298
      %v2471 = vsel %vm1181, %v2193, %v2300
      %v2472 = vsel %vm1181, %v2194, %v2302
      %v2473 = vsel %vm1181, %v2195, %v2304
      %v2474 = vsel %vm1181, %v2196, %v2306
      %v2475 = vsel %vm1181, %v2197, %v2308
      %v2476 = vsel %vm1181, %v2198, %v2310
      %v2477 = vsel %vm1181, %v2199, %v2312
      %v2478 = vsel %vm1181, %v2200, %v2314
      %v2479 = vsel %vm1181, %v2201, %v2316
      %v2480 = vsel %vm1181, %v2202, %v2318
      %v2481 = vsel %vm1181, %v2203, %v2320
      %v2482 = vsel %vm1181, %v2204, %v2322
      %v2483 = vsel %vm1181, %v2205, %v2324
      %v2484 = vsel %vm1181, %v2206, %v2326
      %v2485 = vsel %vm1181, %v2207, %v2328
      %v2486 = vsel %vm1181, %v2208, %v2330
      %v2487 = vsel %vm1181, %v2209, %v2332
      %v2488 = vsel %vm1181, %v2210, %v2334
      %v2489 = vsel %vm1214, %v2457, %v2368
      %v2490 = vsel %vm1214, %v2458, %v2370
      %v2491 = vsel %vm1214, %v2459, %v2372
      %v2492 = vsel %vm1214, %v2460, %v2374
      %v2493 = vsel %vm1214, %v2461, %v2376
      %v2494 = vsel %vm1214, %v2462, %v2378
      %v2495 = vsel %vm1214, %v2463, %v2380
      %v2496 = vsel %vm1214, %v2464, %v2382
      %v2497 = vsel %vm1214, %v2465, %v2384
      %v2498 = vsel %vm1214, %v2466, %v2386
      %v2499 = vsel %vm1214, %v2467, %v2388
      %v2500 = vsel %vm1214, %v2468, %v2390
      %v2501 = vsel %vm1214, %v2469, %v2392
      %v2502 = vsel %vm1214, %v2470, %v2394
      %v2503 = vsel %vm1214, %v2471, %v2396
      %v2504 = vsel %vm1214, %v2472, %v2398
      %v2505 = vsel %vm1214, %v2473, %v2400
      %v2506 = vsel %vm1214, %v2474, %v2402
      %v2507 = vsel %vm1214, %v2475, %v2404
      %v2508 = vsel %vm1214, %v2476, %v2406
      %v2509 = vsel %vm1214, %v2477, %v2408
      %v2510 = vsel %vm1214, %v2478, %v2410
      %v2511 = vsel %vm1214, %v2479, %v2412
      %v2512 = vsel %vm1214, %v2480, %v2414
      %v2513 = vsel %vm1214, %v2481, %v2416
      %v2514 = vsel %vm1214, %v2482, %v2418
      %v2515 = vsel %vm1214, %v2483, %v2420
      %v2516 = vsel %vm1214, %v2484, %v2422
      %v2517 = vsel %vm1214, %v2485, %v2424
      %v2518 = vsel %vm1214, %v2486, %v2426
      %v2519 = vsel %vm1214, %v2487, %v2420
      %v2520 = vsel %vm1214, %v2488, %v2422
      %v2521 = vld [vmem:[%s4] sm:$0xff]
      %v2522 = vld [vmem:[%s4 + $0x8] sm:$0xff]
      %v2523 = vld [vmem:[%s4 + $0x10] sm:$0xff]
      %v2524 = vld [vmem:[%s4 + $0x18] sm:$0xff]
      %v2525 = vld [vmem:[%s4 + $0x20] sm:$0xf]
      %v2526 = vld [vmem:[%s5] sm:$0x1]
      %v2528 = vperm.slane %v2526, 0
      %v2531 = vsel %vm1256, %v2489, 0
      %v2534 = vsel %vm1256, %v2490, 0
      %v2537 = vsel %vm1256, %v2491, 0
      %v2540 = vsel %vm1256, %v2492, 0
      %v2543 = vsel %vm1256, %v2493, 0
      %v2546 = vsel %vm1256, %v2494, 0
      %v2549 = vsel %vm1256, %v2495, 0
      %v2552 = vsel %vm1256, %v2496, 0
      %v2555 = vsel %vm1256, %v2497, 0
      %v2558 = vsel %vm1256, %v2498, 0
      %v2561 = vsel %vm1256, %v2499, 0
      %v2564 = vsel %vm1256, %v2500, 0
      %v2567 = vsel %vm1256, %v2501, 0
      %v2570 = vsel %vm1256, %v2502, 0
      %v2573 = vsel %vm1256, %v2503, 0
      %v2576 = vsel %vm1256, %v2504, 0
      %v2579 = vsel %vm1256, %v2505, 0
      %v2582 = vsel %vm1256, %v2506, 0
      %v2585 = vsel %vm1256, %v2507, 0
      %v2588 = vsel %vm1256, %v2508, 0
      %v2591 = vsel %vm1256, %v2509, 0
      %v2594 = vsel %vm1256, %v2510, 0
      %v2597 = vsel %vm1256, %v2511, 0
      %v2600 = vsel %vm1256, %v2512, 0
      %v2603 = vsel %vm1256, %v2513, 0
      %v2606 = vsel %vm1256, %v2514, 0
      %v2609 = vsel %vm1256, %v2515, 0
      %v2612 = vsel %vm1256, %v2516, 0
      %v2615 = vsel %vm1256, %v2517, 0
      %v2618 = vsel %vm1256, %v2518, 0
      %v2621 = vsel %vm1256, %v2519, 0
      %v2624 = vsel %vm1256, %v2520, 0
      %v2627 = vsel %vm1353, %v2525, 0
      %2629 = vmatpush.msra.mxu0 0.0
      %2630 = vmatpush.msra.mxu0 0.0
      %2631 = vmatpush.msra.mxu0 0.0
      %2632 = vmatpush.msra.mxu0 0.0
      %2633 = vmatpush.msra.mxu0 0.0
      %2634 = vmatpush.msra.mxu0 0.0
      %2635 = vmatpush.msra.mxu0 0.0
      %2636 = vmatpush.msra.mxu0 0.0
      %2637 = vmatpush.msra.mxu0 0.0
      %2638 = vmatpush.msra.mxu0 0.0
      %2639 = vmatpush.msra.mxu0 0.0
      %2640 = vmatpush.msra.mxu0 %v2627
      %2641 = vmatpush.msra.mxu0 %v2524
      %2642 = vmatpush.msra.mxu0 %v2523
      %2643 = vmatpush.msra.mxu0 %v2522
      %2644 = vmatpush.msra.mxu0 %v2521
      %2645 = vmatmul.f32.gmra.mxu0 %v2531
      %v2646 = vpop.f32.mrf.mxu0
      %v2647 = vadd.f32 %v2528, %v2646
      %2648 = vmatmul.f32.gmra.mxu0 %v2534
      %v2649 = vpop.f32.mrf.mxu0
      %v2650 = vadd.f32 %v2528, %v2649
      %2651 = vmatmul.f32.gmra.mxu0 %v2537
      %v2652 = vpop.f32.mrf.mxu0
      %v2653 = vadd.f32 %v2528, %v2652
      %2654 = vmatmul.f32.gmra.mxu0 %v2540
      %v2655 = vpop.f32.mrf.mxu0
      %v2656 = vadd.f32 %v2528, %v2655
      %2657 = vmatmul.f32.gmra.mxu0 %v2543
      %v2658 = vpop.f32.mrf.mxu0
      %v2659 = vadd.f32 %v2528, %v2658
      %2660 = vmatmul.f32.gmra.mxu0 %v2546
      %v2661 = vpop.f32.mrf.mxu0
      %v2662 = vadd.f32 %v2528, %v2661
      %2663 = vmatmul.f32.gmra.mxu0 %v2549
      %v2664 = vpop.f32.mrf.mxu0
      %v2665 = vadd.f32 %v2528, %v2664
      %2666 = vmatmul.f32.gmra.mxu0 %v2552
      %v2667 = vpop.f32.mrf.mxu0
      %v2668 = vadd.f32 %v2528, %v2667
      %2669 = vmatmul.f32.gmra.mxu0 %v2555
      %v2670 = vpop.f32.mrf.mxu0
      %v2671 = vadd.f32 %v2528, %v2670
      %2672 = vmatmul.f32.gmra.mxu0 %v2558
      %v2673 = vpop.f32.mrf.mxu0
      %v2674 = vadd.f32 %v2528, %v2673
      %2675 = vmatmul.f32.gmra.mxu0 %v2561
      %v2676 = vpop.f32.mrf.mxu0
      %v2677 = vadd.f32 %v2528, %v2676
      %2678 = vmatmul.f32.gmra.mxu0 %v2564
      %v2679 = vpop.f32.mrf.mxu0
      %v2680 = vadd.f32 %v2528, %v2679
      %2681 = vmatmul.f32.gmra.mxu0 %v2567
      %v2682 = vpop.f32.mrf.mxu0
      %v2683 = vadd.f32 %v2528, %v2682
      %2684 = vmatmul.f32.gmra.mxu0 %v2570
      %v2685 = vpop.f32.mrf.mxu0
      %v2686 = vadd.f32 %v2528, %v2685
      %2687 = vmatmul.f32.gmra.mxu0 %v2573
      %v2688 = vpop.f32.mrf.mxu0
      %v2689 = vadd.f32 %v2528, %v2688
      %2690 = vmatmul.f32.gmra.mxu0 %v2576
      %v2691 = vpop.f32.mrf.mxu0
      %v2692 = vadd.f32 %v2528, %v2691
      %2693 = vmatmul.f32.gmra.mxu0 %v2579
      %v2694 = vpop.f32.mrf.mxu0
      %v2695 = vadd.f32 %v2528, %v2694
      %2696 = vmatmul.f32.gmra.mxu0 %v2582
      %v2697 = vpop.f32.mrf.mxu0
      %v2698 = vadd.f32 %v2528, %v2697
      %2699 = vmatmul.f32.gmra.mxu0 %v2585
      %v2700 = vpop.f32.mrf.mxu0
      %v2701 = vadd.f32 %v2528, %v2700
      %2702 = vmatmul.f32.gmra.mxu0 %v2588
      %v2703 = vpop.f32.mrf.mxu0
      %v2704 = vadd.f32 %v2528, %v2703
      %2705 = vmatmul.f32.gmra.mxu0 %v2591
      %v2706 = vpop.f32.mrf.mxu0
      %v2707 = vadd.f32 %v2528, %v2706
      %2708 = vmatmul.f32.gmra.mxu0 %v2594
      %v2709 = vpop.f32.mrf.mxu0
      %v2710 = vadd.f32 %v2528, %v2709
      %2711 = vmatmul.f32.gmra.mxu0 %v2597
      %v2712 = vpop.f32.mrf.mxu0
      %v2713 = vadd.f32 %v2528, %v2712
      %2714 = vmatmul.f32.gmra.mxu0 %v2600
      %v2715 = vpop.f32.mrf.mxu0
      %v2716 = vadd.f32 %v2528, %v2715
      %2717 = vmatmul.f32.gmra.mxu0 %v2603
      %v2718 = vpop.f32.mrf.mxu0
      %v2719 = vadd.f32 %v2528, %v2718
      %2720 = vmatmul.f32.gmra.mxu0 %v2606
      %v2721 = vpop.f32.mrf.mxu0
      %v2722 = vadd.f32 %v2528, %v2721
      %2723 = vmatmul.f32.gmra.mxu0 %v2609
      %v2724 = vpop.f32.mrf.mxu0
      %v2725 = vadd.f32 %v2528, %v2724
      %2726 = vmatmul.f32.gmra.mxu0 %v2612
      %v2727 = vpop.f32.mrf.mxu0
      %v2728 = vadd.f32 %v2528, %v2727
      %2729 = vmatmul.f32.gmra.mxu0 %v2615
      %v2730 = vpop.f32.mrf.mxu0
      %v2731 = vadd.f32 %v2528, %v2730
      %2732 = vmatmul.f32.gmra.mxu0 %v2618
      %v2733 = vpop.f32.mrf.mxu0
      %v2734 = vadd.f32 %v2528, %v2733
      %2735 = vmatmul.f32.gmra.mxu0 %v2621
      %v2736 = vpop.f32.mrf.mxu0
      %v2737 = vadd.f32 %v2528, %v2736
      %2738 = vmatmul.f32.gmra.mxu0 %v2624
      %v2739 = vpop.f32.mrf.mxu0
      %v2740 = vadd.f32 %v2528, %v2739
      %2741 = vdwg.mxu0
      %v2742 = vmul.f32 %v2647, 0.1
      %v2743 = vmul.f32 %v2650, 0.1
      %v2744 = vmul.f32 %v2653, 0.1
      %v2745 = vmul.f32 %v2656, 0.1
      %v2746 = vmul.f32 %v2659, 0.1
      %v2747 = vmul.f32 %v2662, 0.1
      %v2748 = vmul.f32 %v2665, 0.1
      %v2749 = vmul.f32 %v2668, 0.1
      %v2750 = vmul.f32 %v2671, 0.1
      %v2751 = vmul.f32 %v2674, 0.1
      %v2752 = vmul.f32 %v2677, 0.1
      %v2753 = vmul.f32 %v2680, 0.1
      %v2754 = vmul.f32 %v2683, 0.1
      %v2755 = vmul.f32 %v2686, 0.1
      %v2756 = vmul.f32 %v2689, 0.1
      %v2757 = vmul.f32 %v2692, 0.1
      %v2758 = vmul.f32 %v2695, 0.1
      %v2759 = vmul.f32 %v2698, 0.1
      %v2760 = vmul.f32 %v2701, 0.1
      %v2761 = vmul.f32 %v2704, 0.1
      %v2762 = vmul.f32 %v2707, 0.1
      %v2763 = vmul.f32 %v2710, 0.1
      %v2764 = vmul.f32 %v2713, 0.1
      %v2765 = vmul.f32 %v2716, 0.1
      %v2766 = vmul.f32 %v2719, 0.1
      %v2767 = vmul.f32 %v2722, 0.1
      %v2768 = vmul.f32 %v2725, 0.1
      %v2769 = vmul.f32 %v2728, 0.1
      %v2770 = vmul.f32 %v2731, 0.1
      %v2771 = vmul.f32 %v2734, 0.1
      %v2772 = vmul.f32 %v2737, 0.1
      %v2773 = vmul.f32 %v2740, 0.1
      %v2774 = vadd.f32 %v2742, %v253
      %v2775 = vadd.f32 %v2743, %v254
      %v2776 = vadd.f32 %v2744, %v255
      %v2777 = vadd.f32 %v2745, %v256
      %v2778 = vadd.f32 %v2746, %v257
      %v2779 = vadd.f32 %v2747, %v258
      %v2780 = vadd.f32 %v2748, %v259
      %v2781 = vadd.f32 %v2749, %v260
      %v2782 = vadd.f32 %v2750, %v261
      %v2783 = vadd.f32 %v2751, %v262
      %v2784 = vadd.f32 %v2752, %v263
      %v2785 = vadd.f32 %v2753, %v264
      %v2786 = vadd.f32 %v2754, %v265
      %v2787 = vadd.f32 %v2755, %v266
      %v2788 = vadd.f32 %v2756, %v267
      %v2789 = vadd.f32 %v2757, %v268
      %v2790 = vadd.f32 %v2758, %v269
      %v2791 = vadd.f32 %v2759, %v270
      %v2792 = vadd.f32 %v2760, %v271
      %v2793 = vadd.f32 %v2761, %v272
      %v2794 = vadd.f32 %v2762, %v273
      %v2795 = vadd.f32 %v2763, %v274
      %v2796 = vadd.f32 %v2764, %v275
      %v2797 = vadd.f32 %v2765, %v276
      %v2798 = vadd.f32 %v2766, %v277
      %v2799 = vadd.f32 %v2767, %v278
      %v2800 = vadd.f32 %v2768, %v279
      %v2801 = vadd.f32 %v2769, %v280
      %v2802 = vadd.f32 %v2770, %v281
      %v2803 = vadd.f32 %v2771, %v282
      %v2804 = vadd.f32 %v2772, %v283
      %v2805 = vadd.f32 %v2773, %v284
      %2806 = vst.msk [vmem:[%s252] sm:$0xff] %vm873, %v2774
      %2807 = vst.msk [vmem:[%s252 + $0x8] sm:$0xff] %vm873, %v2775
      %2808 = vst.msk [vmem:[%s252 + $0x10] sm:$0xff] %vm873, %v2776
      %2809 = vst.msk [vmem:[%s252 + $0x18] sm:$0xff] %vm873, %v2777
      %2810 = vst.msk [vmem:[%s252 + $0x20] sm:$0xff] %vm873, %v2778
      %2811 = vst.msk [vmem:[%s252 + $0x28] sm:$0xff] %vm873, %v2779
      %2812 = vst.msk [vmem:[%s252 + $0x30] sm:$0xff] %vm873, %v2780
      %2813 = vst.msk [vmem:[%s252 + $0x38] sm:$0xff] %vm873, %v2781
      %2814 = vst.msk [vmem:[%s252 + $0x40] sm:$0xff] %vm873, %v2782
      %2815 = vst.msk [vmem:[%s252 + $0x48] sm:$0xff] %vm873, %v2783
      %2816 = vst.msk [vmem:[%s252 + $0x50] sm:$0xff] %vm873, %v2784
      %2817 = vst.msk [vmem:[%s252 + $0x58] sm:$0xff] %vm873, %v2785
      %2818 = vst.msk [vmem:[%s252 + $0x60] sm:$0xff] %vm873, %v2786
      %2819 = vst.msk [vmem:[%s252 + $0x68] sm:$0xff] %vm873, %v2787
      %2820 = vst.msk [vmem:[%s252 + $0x70] sm:$0xff] %vm873, %v2788
      %2821 = vst.msk [vmem:[%s252 + $0x78] sm:$0xff] %vm873, %v2789
      %2822 = vst.msk [vmem:[%s252 + $0x80] sm:$0xff] %vm873, %v2790
      %2823 = vst.msk [vmem:[%s252 + $0x88] sm:$0xff] %vm873, %v2791
      %2824 = vst.msk [vmem:[%s252 + $0x90] sm:$0xff] %vm873, %v2792
      %2825 = vst.msk [vmem:[%s252 + $0x98] sm:$0xff] %vm873, %v2793
      %2826 = vst.msk [vmem:[%s252 + $0xa0] sm:$0xff] %vm873, %v2794
      %2827 = vst.msk [vmem:[%s252 + $0xa8] sm:$0xff] %vm873, %v2795
      %2828 = vst.msk [vmem:[%s252 + $0xb0] sm:$0xff] %vm873, %v2796
      %2829 = vst.msk [vmem:[%s252 + $0xb8] sm:$0xff] %vm873, %v2797
      %2830 = vst.msk [vmem:[%s252 + $0xc0] sm:$0xff] %vm873, %v2798
      %2831 = vst.msk [vmem:[%s252 + $0xc8] sm:$0xff] %vm873, %v2799
      %2832 = vst.msk [vmem:[%s252 + $0xd0] sm:$0xff] %vm873, %v2800
      %2833 = vst.msk [vmem:[%s252 + $0xd8] sm:$0xff] %vm873, %v2801
      %2834 = vst.msk [vmem:[%s252 + $0xe0] sm:$0xff] %vm873, %v2802
      %2835 = vst.msk [vmem:[%s252 + $0xe8] sm:$0xff] %vm873, %v2803
      %2836 = vst.msk [vmem:[%s252 + $0xf0] sm:$0xff] %vm873, %v2804
      %2837 = vst.msk [vmem:[%s252 + $0xf8] sm:$0xff] %vm873, %v2805
      %p2838 = scmp.lt.s32.totalorder %s18, 1
      %s2839 = scalar_select %p2838, %s18, 1
      %s2840 = smul.addr %s2839, 32
      %s2841 = smul.addr %s2840, 8
      %s2842 = scalar_lea.vmem %s6, %s2841
      // Predicated region
      $region45: #{residual_block_nchw.1} parent=43 // pred_check
        %p2843 = pneg %p167
      $region46: #{residual_block_nchw.1} parent=43 // pred_check_branch
        %2845 = sbr.rel (%p2843) target = $region48
      $region47: #{residual_block_nchw.1} parent=43 // pred_region
        _
      $region48: #{residual_block_nchw.1} parent=43 // pred_fallthru
        _
    $region44: #{residual_block_nchw.1} parent=5 // pred_fallthru
      _
    %p2846 = scmp.le.s32.totalorder 2, %s13
    // Predicated region
    $region49: #{residual_block_nchw.1} parent=5 // pred_check
      %p2847 = pneg %p2846
    $region50: #{residual_block_nchw.1} parent=5 // pred_check_branch
      %2849 = sbr.rel (%p2847) target = $region52
    $region51: #{residual_block_nchw.1} parent=5 // pred_region
      %s2850 = ssub.s32 %s13, 2
      // Predicated region
      $region53: #{residual_block_nchw.1} parent=51 // pred_check
        %p2851 = pneg %p173
      $region54: #{residual_block_nchw.1} parent=51 // pred_check_branch
        %2853 = sbr.rel (%p2851) target = $region56
      $region55: #{residual_block_nchw.1} parent=51 // pred_region
        %p2854 = scmp.lt.s32.totalorder %s19, 1
        %s2855 = scalar_select %p2854, %s19, 1
        %s2856 = smul.addr %s2855, 32
        %s2857 = smul.addr %s2856, 8
        %s2858 = scalar_lea.vmem %s6, %s2857
      $region56: #{residual_block_nchw.1} parent=51 // pred_fallthru
        _
    $region52: #{residual_block_nchw.1} parent=5 // pred_fallthru
      _
  $region6: #{residual_block_nchw.1} parent=0 // loop_footer
    %s17 = sadd.s32 1, %s13
  $region7: #{residual_block_nchw.1} parent=0 // loop_footer_branch
    %12 = sbr.rel target = $region3
  $region8: #{residual_block_nchw.1} parent=0 // loop_exit
    _

</llo_original>
